<compile_context>
chip_gen: v6e
topology: v6e:2x2x1
jax: 0.10.0
libtpu: 0.0.40
codegen_flags: <defaults>
</compile_context>

<pallas_src>
import jax
import jax.numpy as jnp
import numpy as np
from jax import lax
from jax.experimental import pallas as pl
from jax.experimental.pallas import tpu as pltpu


def _round_up(x, m):
    return ((x + m - 1) // m) * m


def _choose_tm(n_flat):
    """Pixel-tile width: <=512, multiple of 128, prefer an even grid (v7x megacore)."""
    n128 = _round_up(n_flat, 128)
    if n128 > 512:
        return 512
    if n128 >= 512 and n128 % 256 == 0:
        return n128 // 2          # 2-way grid for the shipped size (N=512 -> TM=256)
    return n128


# ----------------------------------------------------------------------------
# Fused kernel: conv1(3x3 valid)+ReLU6  ->  ConvLSTM gates (zero state)
# ----------------------------------------------------------------------------
def _make_fused_kernel(*, cout, tm, l1, width, halo):
    """Builds the fused kernel.

    Refs (all channel-major, lane = flat pixel index in (B, H, W) geometry):
      p1_ref : (K1P, W1)      bf16  conv1 "flat im2col" patches, resident (constant index map)
      msk_ref: (1,  W1)       f32   1.0 at valid conv1 output columns, 0.0 at pad/garbage cols
      w1_ref : (Cout, K1P)    bf16  conv1 weights (rows=Cout, cols=(kh,kw,ci), K padded to 48)
      b1_ref : (Cout, 1)      f32   conv1 bias
      wg_ref : (3C, 9C)       bf16  gate weights, x-half only, rows = [in, out, cell]
      bg_ref : (3C, 1)        f32   gate bias, rows = [in, out, cell]
      o_ref  : (Cout, TM)     f32   new hidden state tile (lane-dense store)
    """

    def kernel(p1_ref, msk_ref, w1_ref, b1_ref, wg_ref, bg_ref, o_ref):
        base = pl.multiple_of(pl.program_id(0) * tm, 128)

        # ---- conv1: one K=48 matmul over the haloed window, bias + ReLU6 (f32) ----
        y1 = jnp.dot(w1_ref[...], p1_ref[:, pl.ds(base, l1)],
                     preferred_element_type=jnp.float32)
        y1 = jnp.clip(y1 + b1_ref[...], 0.0, 6.0)                       # (Cout, L1)

        # Zero the columns that are not valid conv1 outputs: y1 now behaves exactly like
        # the zero-padded h1 slab in flat geometry (pad rows/cols and cross-image bleed
        # all land on masked columns).
        y1 = (y1 * msk_ref[:, pl.ds(base, l1)]).astype(jnp.bfloat16)

        # ---- ConvLSTM gates, zero initial state: 9 shifted matmuls, f32 accumulation ----
        wg = wg_ref[...]                                                # (3C, 9C) bf16
        gacc = jnp.zeros((3 * cout, tm), jnp.float32)
        for tap in range(9):
            kh, kw = divmod(tap, 3)
            off = halo + (kh - 1) * width + (kw - 1)                    # static, in [15, 49]
            gacc = gacc + jnp.dot(wg[:, tap * cout:(tap + 1) * cout],   # (3C, C)
                                  y1[:, off:off + tm],                  # (C, TM)
                                  preferred_element_type=jnp.float32)
        gacc = gacc + bg_ref[...]

        # sigmoid(x) = 0.5*(tanh(0.5*x)+1): one EUP push per gate (v5e/v6e friendly)
        in_g = 0.5 * jnp.tanh(0.5 * gacc[:cout, :]) + 0.5
        out_g = 0.5 * jnp.tanh(0.5 * gacc[cout:2 * cout, :]) + 0.5
        cell = in_g * jnp.tanh(gacc[2 * cout:, :])                      # remember*c_prev == 0
        o_ref[...] = (out_g * jnp.tanh(cell)).astype(o_ref.dtype)

    return kernel


# ----------------------------------------------------------------------------
# Forward wrapper (fresh LSTM state, i.e. self.state is None)
# ----------------------------------------------------------------------------
@jax.jit
def recurrent_conv_forward(x_nchw, params):
    """RecurrentConv.forward with self.state == None.

    x_nchw: (B, Cin, H, W) float32
    returns: (B, Cout, H-2, W-2) float32  (the new LSTM hidden state)
    """
    w1, b1, wg, bg = params["w1"], params["b1"], params["wg"], params["bg"]
    B, Cin, H, W = x_nchw.shape
    Cout = w1.shape[-1]
    Ho, Wo = H - 2, W - 2
    N = B * H * W                                   # flat pixel axis in (B, H, W) geometry

    TM = _choose_tm(N)
    N_t = _round_up(N, TM)
    HALO = _round_up(W + 2, 32)                     # left halo >= W+1 (gate conv shifts)
    L1 = TM + _round_up(2 * HALO, 128)              # per-tile h1 window (halo both sides)
    W1 = N_t + (L1 - TM)                            # padded width of resident patch slab
    K1 = 9 * Cin
    K1P = _round_up(K1, 16)                         # bf16 sublane pack

    # ---- host prep: channel-major flat input + conv1 taps (flat im2col) ----
    x_f = jnp.transpose(x_nchw, (1, 0, 2, 3)).reshape(Cin, N)          # (Cin, N)
    x_ext = jnp.pad(x_f, ((0, 0), (0, 2 * W + 8)))                     # slack for shifts<=2W+2
    taps = [x_ext[:, kh * W + kw: kh * W + kw + N]
            for kh in range(3) for kw in range(3)]
    p1 = jnp.concatenate(taps, axis=0)                                 # (9*Cin, N), (kh,kw,ci)
    p1 = jnp.pad(p1, ((0, K1P - K1), (HALO, W1 - HALO - N))).astype(jnp.bfloat16)

    # validity mask of conv1 output columns (r < Ho and c < Wo), in padded-slab coordinates
    idx = jnp.arange(N)
    rr = (idx % (H * W)) // W
    cc = idx % W
    valid = ((rr < Ho) & (cc < Wo)).astype(jnp.float32)
    msk = jnp.pad(valid[None, :], ((0, 0), (HALO, W1 - HALO - N)))     # (1, W1)

    # conv1 weights: (3,3,Cin,Cout) -> (Cout, 9*Cin), K padded to 48
    w1_t = jnp.pad(w1.reshape(K1, Cout).T, ((0, 0), (0, K1P - K1))).astype(jnp.bfloat16)
    b1_c = b1.reshape(Cout, 1).astype(jnp.float32)

    # gate weights: x-half only (h_prev == 0); drop dead remember-gate rows -> [in, out, cell]
    wg_x = wg[:, :, :Cout, :]                                          # (3,3,C,4C)
    wg_sel = jnp.concatenate([wg_x[..., :Cout],
                              wg_x[..., 2 * Cout:3 * Cout],
                              wg_x[..., 3 * Cout:]], axis=-1)          # (3,3,C,3C)
    wg_t = wg_sel.reshape(9 * Cout, 3 * Cout).T.astype(jnp.bfloat16)   # (3C, 9C)
    bg_sel = jnp.concatenate([bg[:Cout], bg[2 * Cout:3 * Cout], bg[3 * Cout:]])
    bg_c = bg_sel.reshape(3 * Cout, 1).astype(jnp.float32)

    kernel = _make_fused_kernel(cout=Cout, tm=TM, l1=L1, width=W, halo=HALO)
    hid_flat = pl.pallas_call(
        kernel,
        out_shape=jax.ShapeDtypeStruct((Cout, N_t), jnp.float32),
        grid=(N_t // TM,),
        in_specs=[
            pl.BlockSpec((K1P, W1), lambda t: (0, 0)),          # patches, resident
            pl.BlockSpec((1, W1), lambda t: (0, 0)),            # validity mask, resident
            pl.BlockSpec((Cout, K1P), lambda t: (0, 0)),        # conv1 weights, resident
            pl.BlockSpec((Cout, 1), lambda t: (0, 0)),          # conv1 bias
            pl.BlockSpec((3 * Cout, 9 * Cout), lambda t: (0, 0)),  # gate weights, resident
            pl.BlockSpec((3 * Cout, 1), lambda t: (0, 0)),      # gate bias
        ],
        out_specs=pl.BlockSpec((Cout, TM), lambda t: (0, t)),
        compiler_params=pltpu.CompilerParams(
            dimension_semantics=("parallel",),
            vmem_limit_bytes=32 * 1024 * 1024,
        ),
    )(p1, msk, w1_t, b1_c, wg_t, bg_c)

    # TODO(synk): persistent self.state across calls is host-side module state; only the
    #             fresh-state (state=None) forward is materialized here. For very large
    #             B*H*W, the resident patch slab should be tiled (with halo) as well.
    hid = hid_flat[:, :N].reshape(Cout, B, H, W)[:, :, :Ho, :Wo]
    return jnp.transpose(hid, (1, 0, 2, 3))                            # (B, Cout, Ho, Wo)


# ----------------------------------------------------------------------------
# Pure-JAX reference (lax.conv, full zero-state path) for correctness checking
# ----------------------------------------------------------------------------
def _reference(x_nchw, params):
    w1, b1, wg, bg = params["w1"], params["b1"], params["wg"], params["bg"]
    w1_oihw = jnp.transpose(w1, (3, 2, 0, 1))
    wg_oihw = jnp.transpose(wg, (3, 2, 0, 1))
    dn = ("NCHW", "OIHW", "NCHW")

    y = lax.conv_general_dilated(x_nchw, w1_oihw, (1, 1), "VALID",
                                 dimension_numbers=dn) + b1[None, :, None, None]
    y = jnp.clip(y, 0.0, 6.0)

    h_prev = jnp.zeros_like(y)
    c_prev = jnp.zeros_like(y)
    stacked = jnp.concatenate([y, h_prev], axis=1)
    gates = lax.conv_general_dilated(stacked, wg_oihw, (1, 1), "SAME",
                                     dimension_numbers=dn) + bg[None, :, None, None]
    ig, rg, og, cg = jnp.split(gates, 4, axis=1)
    cell = jax.nn.sigmoid(rg) * c_prev + jax.nn.sigmoid(ig) * jnp.tanh(cg)
    hidden = jax.nn.sigmoid(og) * jnp.tanh(cell)
    return hidden


# ----------------------------------------------------------------------------
# Main
# ----------------------------------------------------------------------------
if __name__ == "__main__":
    B, Cin, H, W = 2, 4, 16, 16
    Cout = 32
    key = jax.random.PRNGKey(0)
    kx, kw1, kb1, kwg, kbg = jax.random.split(key, 5)

    x = jax.random.normal(kx, (B, Cin, H, W), dtype=jnp.float32)

    # Deterministic synthetic parameters (shapes match the PyTorch module):
    #   ConvLayer.conv2d.weight : (Cout, Cin, 3, 3)        -> stored as (3, 3, Cin, Cout)
    #   ConvLSTM.Gates.weight   : (4*Cout, 2*Cout, 3, 3)   -> stored as (3, 3, 2*Cout, 4*Cout)
    params = {
        "w1": 0.1 * jax.random.normal(kw1, (3, 3, Cin, Cout), dtype=jnp.float32),
        "b1": 0.1 * jax.random.normal(kb1, (Cout,), dtype=jnp.float32),
        "wg": 0.1 * jax.random.normal(kwg, (3, 3, 2 * Cout, 4 * Cout), dtype=jnp.float32),
        "bg": 0.1 * jax.random.normal(kbg, (4 * Cout,), dtype=jnp.float32),
    }

    out = jax.block_until_ready(recurrent_conv_forward(x, params))
    ref = jax.block_until_ready(_reference(x, params))

    assert out.shape == (B, Cout, H - 2, W - 2), out.shape
    assert np.allclose(np.asarray(out), np.asarray(ref), atol=1e-2, rtol=1e-2)

    print("KERNEL_OK")
</pallas_src>

<mosaic_0001>
module attributes {stable_mosaic.version = 11 : i64} {
  func.func @kernel(%arg0: i32, %arg1: memref<48x640xbf16, #tpu.memory_space<vmem>>, %arg2: memref<1x640xf32, #tpu.memory_space<vmem>>, %arg3: memref<32x48xbf16, #tpu.memory_space<vmem>>, %arg4: memref<32x1xf32, #tpu.memory_space<vmem>>, %arg5: memref<96x288xbf16, #tpu.memory_space<vmem>>, %arg6: memref<96x1xf32, #tpu.memory_space<vmem>>, %arg7: memref<32x256xf32, #tpu.memory_space<vmem>>) attributes {dimension_semantics = [#tpu.dimension_semantics<parallel>], iteration_bounds = array<i64: 2>, scalar_prefetch = 0 : i64, scratch_operands = 0 : i64, tpu.core_type = #tpu.core_type<tc>, window_params = [{pipeline_mode = #tpu.pipeline_mode<synchronous>, transform_indices = @transform_0, window_bounds = array<i64: 48, 640>}, {pipeline_mode = #tpu.pipeline_mode<synchronous>, transform_indices = @transform_1, window_bounds = array<i64: 1, 640>}, {pipeline_mode = #tpu.pipeline_mode<synchronous>, transform_indices = @transform_2, window_bounds = array<i64: 32, 48>}, {pipeline_mode = #tpu.pipeline_mode<synchronous>, transform_indices = @transform_3, window_bounds = array<i64: 32, 1>}, {pipeline_mode = #tpu.pipeline_mode<synchronous>, transform_indices = @transform_4, window_bounds = array<i64: 96, 288>}, {pipeline_mode = #tpu.pipeline_mode<synchronous>, transform_indices = @transform_5, window_bounds = array<i64: 96, 1>}, {transform_indices = @transform_6, window_bounds = array<i64: 32, 256>}]} {
    %c256_i32 = arith.constant 256 : i32
    %0 = arith.muli %arg0, %c256_i32 : i32
    %1 = tpu.assume_multiple %0, 128 : i32
    %c0 = arith.constant 0 : index
    %c0_0 = arith.constant 0 : index
    %2 = vector.load %arg3[%c0, %c0_0] : memref<32x48xbf16, #tpu.memory_space<vmem>>, vector<32x48xbf16>
    %c0_1 = arith.constant 0 : index
    %3 = arith.index_cast %1 : i32 to index
    %4 = vector.load %arg1[%c0_1, %3] : memref<48x640xbf16, #tpu.memory_space<vmem>>, vector<48x384xbf16>
    %cst = arith.constant dense<0.000000e+00> : vector<32x384xf32>
    %5 = tpu.matmul %2, %4, %cst {dimension_numbers = #tpu.dot_dimension_numbers<[1], [0], [0], [1], [0, 0, 1, 1], [], []>} : vector<32x48xbf16>, vector<48x384xbf16>, vector<32x384xf32> -> vector<32x384xf32>
    %c0_2 = arith.constant 0 : index
    %c0_3 = arith.constant 0 : index
    %6 = vector.load %arg4[%c0_2, %c0_3] : memref<32x1xf32, #tpu.memory_space<vmem>>, vector<32x1xf32>
    %7 = vector.broadcast %6 : vector<32x1xf32> to vector<32x384xf32>
    %8 = arith.addf %5, %7 : vector<32x384xf32>
    %cst_4 = arith.constant 0.000000e+00 : f32
    %cst_5 = arith.constant 6.000000e+00 : f32
    %9 = vector.broadcast %cst_4 : f32 to vector<32x384xf32>
    %10 = arith.maximumf %9, %8 : vector<32x384xf32>
    %11 = vector.broadcast %cst_5 : f32 to vector<32x384xf32>
    %12 = arith.minimumf %11, %10 : vector<32x384xf32>
    %c0_6 = arith.constant 0 : index
    %13 = arith.index_cast %1 : i32 to index
    %14 = vector.load %arg2[%c0_6, %13] : memref<1x640xf32, #tpu.memory_space<vmem>>, vector<1x384xf32>
    %15 = vector.broadcast %14 : vector<1x384xf32> to vector<32x384xf32>
    %16 = arith.mulf %12, %15 : vector<32x384xf32>
    %17 = arith.truncf %16 : vector<32x384xf32> to vector<32x384xbf16>
    %c0_7 = arith.constant 0 : index
    %c0_8 = arith.constant 0 : index
    %18 = vector.load %arg5[%c0_7, %c0_8] : memref<96x288xbf16, #tpu.memory_space<vmem>>, vector<96x288xbf16>
    %cst_9 = arith.constant 0.000000e+00 : f32
    %19 = vector.broadcast %cst_9 : f32 to vector<96x256xf32>
    %20 = vector.extract_strided_slice %18 {offsets = [0, 0], sizes = [96, 32], strides = [1, 1]} : vector<96x288xbf16> to vector<96x32xbf16>
    %21 = vector.extract_strided_slice %17 {offsets = [0, 15], sizes = [32, 256], strides = [1, 1]} : vector<32x384xbf16> to vector<32x256xbf16>
    %cst_10 = arith.constant dense<0.000000e+00> : vector<96x256xf32>
    %22 = tpu.matmul %20, %21, %cst_10 {dimension_numbers = #tpu.dot_dimension_numbers<[1], [0], [0], [1], [0, 0, 1, 1], [], []>} : vector<96x32xbf16>, vector<32x256xbf16>, vector<96x256xf32> -> vector<96x256xf32>
    %23 = arith.addf %19, %22 : vector<96x256xf32>
    %24 = vector.extract_strided_slice %18 {offsets = [0, 32], sizes = [96, 32], strides = [1, 1]} : vector<96x288xbf16> to vector<96x32xbf16>
    %25 = vector.extract_strided_slice %17 {offsets = [0, 16], sizes = [32, 256], strides = [1, 1]} : vector<32x384xbf16> to vector<32x256xbf16>
    %cst_11 = arith.constant dense<0.000000e+00> : vector<96x256xf32>
    %26 = tpu.matmul %24, %25, %cst_11 {dimension_numbers = #tpu.dot_dimension_numbers<[1], [0], [0], [1], [0, 0, 1, 1], [], []>} : vector<96x32xbf16>, vector<32x256xbf16>, vector<96x256xf32> -> vector<96x256xf32>
    %27 = arith.addf %23, %26 : vector<96x256xf32>
    %28 = vector.extract_strided_slice %18 {offsets = [0, 64], sizes = [96, 32], strides = [1, 1]} : vector<96x288xbf16> to vector<96x32xbf16>
    %29 = vector.extract_strided_slice %17 {offsets = [0, 17], sizes = [32, 256], strides = [1, 1]} : vector<32x384xbf16> to vector<32x256xbf16>
    %cst_12 = arith.constant dense<0.000000e+00> : vector<96x256xf32>
    %30 = tpu.matmul %28, %29, %cst_12 {dimension_numbers = #tpu.dot_dimension_numbers<[1], [0], [0], [1], [0, 0, 1, 1], [], []>} : vector<96x32xbf16>, vector<32x256xbf16>, vector<96x256xf32> -> vector<96x256xf32>
    %31 = arith.addf %27, %30 : vector<96x256xf32>
    %32 = vector.extract_strided_slice %18 {offsets = [0, 96], sizes = [96, 32], strides = [1, 1]} : vector<96x288xbf16> to vector<96x32xbf16>
    %33 = vector.extract_strided_slice %17 {offsets = [0, 31], sizes = [32, 256], strides = [1, 1]} : vector<32x384xbf16> to vector<32x256xbf16>
    %cst_13 = arith.constant dense<0.000000e+00> : vector<96x256xf32>
    %34 = tpu.matmul %32, %33, %cst_13 {dimension_numbers = #tpu.dot_dimension_numbers<[1], [0], [0], [1], [0, 0, 1, 1], [], []>} : vector<96x32xbf16>, vector<32x256xbf16>, vector<96x256xf32> -> vector<96x256xf32>
    %35 = arith.addf %31, %34 : vector<96x256xf32>
    %36 = vector.extract_strided_slice %18 {offsets = [0, 128], sizes = [96, 32], strides = [1, 1]} : vector<96x288xbf16> to vector<96x32xbf16>
    %37 = vector.extract_strided_slice %17 {offsets = [0, 32], sizes = [32, 256], strides = [1, 1]} : vector<32x384xbf16> to vector<32x256xbf16>
    %cst_14 = arith.constant dense<0.000000e+00> : vector<96x256xf32>
    %38 = tpu.matmul %36, %37, %cst_14 {dimension_numbers = #tpu.dot_dimension_numbers<[1], [0], [0], [1], [0, 0, 1, 1], [], []>} : vector<96x32xbf16>, vector<32x256xbf16>, vector<96x256xf32> -> vector<96x256xf32>
    %39 = arith.addf %35, %38 : vector<96x256xf32>
    %40 = vector.extract_strided_slice %18 {offsets = [0, 160], sizes = [96, 32], strides = [1, 1]} : vector<96x288xbf16> to vector<96x32xbf16>
    %41 = vector.extract_strided_slice %17 {offsets = [0, 33], sizes = [32, 256], strides = [1, 1]} : vector<32x384xbf16> to vector<32x256xbf16>
    %cst_15 = arith.constant dense<0.000000e+00> : vector<96x256xf32>
    %42 = tpu.matmul %40, %41, %cst_15 {dimension_numbers = #tpu.dot_dimension_numbers<[1], [0], [0], [1], [0, 0, 1, 1], [], []>} : vector<96x32xbf16>, vector<32x256xbf16>, vector<96x256xf32> -> vector<96x256xf32>
    %43 = arith.addf %39, %42 : vector<96x256xf32>
    %44 = vector.extract_strided_slice %18 {offsets = [0, 192], sizes = [96, 32], strides = [1, 1]} : vector<96x288xbf16> to vector<96x32xbf16>
    %45 = vector.extract_strided_slice %17 {offsets = [0, 47], sizes = [32, 256], strides = [1, 1]} : vector<32x384xbf16> to vector<32x256xbf16>
    %cst_16 = arith.constant dense<0.000000e+00> : vector<96x256xf32>
    %46 = tpu.matmul %44, %45, %cst_16 {dimension_numbers = #tpu.dot_dimension_numbers<[1], [0], [0], [1], [0, 0, 1, 1], [], []>} : vector<96x32xbf16>, vector<32x256xbf16>, vector<96x256xf32> -> vector<96x256xf32>
    %47 = arith.addf %43, %46 : vector<96x256xf32>
    %48 = vector.extract_strided_slice %18 {offsets = [0, 224], sizes = [96, 32], strides = [1, 1]} : vector<96x288xbf16> to vector<96x32xbf16>
    %49 = vector.extract_strided_slice %17 {offsets = [0, 48], sizes = [32, 256], strides = [1, 1]} : vector<32x384xbf16> to vector<32x256xbf16>
    %cst_17 = arith.constant dense<0.000000e+00> : vector<96x256xf32>
    %50 = tpu.matmul %48, %49, %cst_17 {dimension_numbers = #tpu.dot_dimension_numbers<[1], [0], [0], [1], [0, 0, 1, 1], [], []>} : vector<96x32xbf16>, vector<32x256xbf16>, vector<96x256xf32> -> vector<96x256xf32>
    %51 = arith.addf %47, %50 : vector<96x256xf32>
    %52 = vector.extract_strided_slice %18 {offsets = [0, 256], sizes = [96, 32], strides = [1, 1]} : vector<96x288xbf16> to vector<96x32xbf16>
    %53 = vector.extract_strided_slice %17 {offsets = [0, 49], sizes = [32, 256], strides = [1, 1]} : vector<32x384xbf16> to vector<32x256xbf16>
    %cst_18 = arith.constant dense<0.000000e+00> : vector<96x256xf32>
    %54 = tpu.matmul %52, %53, %cst_18 {dimension_numbers = #tpu.dot_dimension_numbers<[1], [0], [0], [1], [0, 0, 1, 1], [], []>} : vector<96x32xbf16>, vector<32x256xbf16>, vector<96x256xf32> -> vector<96x256xf32>
    %55 = arith.addf %51, %54 : vector<96x256xf32>
    %c0_19 = arith.constant 0 : index
    %c0_20 = arith.constant 0 : index
    %56 = vector.load %arg6[%c0_19, %c0_20] : memref<96x1xf32, #tpu.memory_space<vmem>>, vector<96x1xf32>
    %57 = vector.broadcast %56 : vector<96x1xf32> to vector<96x256xf32>
    %58 = arith.addf %55, %57 : vector<96x256xf32>
    %59 = vector.extract_strided_slice %58 {offsets = [0, 0], sizes = [32, 256], strides = [1, 1]} : vector<96x256xf32> to vector<32x256xf32>
    %cst_21 = arith.constant 5.000000e-01 : f32
    %60 = vector.broadcast %cst_21 : f32 to vector<32x256xf32>
    %61 = arith.mulf %60, %59 : vector<32x256xf32>
    %62 = math.tanh %61 : vector<32x256xf32>
    %cst_22 = arith.constant 5.000000e-01 : f32
    %63 = vector.broadcast %cst_22 : f32 to vector<32x256xf32>
    %64 = arith.mulf %63, %62 : vector<32x256xf32>
    %cst_23 = arith.constant 5.000000e-01 : f32
    %65 = vector.broadcast %cst_23 : f32 to vector<32x256xf32>
    %66 = arith.addf %64, %65 : vector<32x256xf32>
    %67 = vector.extract_strided_slice %58 {offsets = [32, 0], sizes = [32, 256], strides = [1, 1]} : vector<96x256xf32> to vector<32x256xf32>
    %cst_24 = arith.constant 5.000000e-01 : f32
    %68 = vector.broadcast %cst_24 : f32 to vector<32x256xf32>
    %69 = arith.mulf %68, %67 : vector<32x256xf32>
    %70 = math.tanh %69 : vector<32x256xf32>
    %cst_25 = arith.constant 5.000000e-01 : f32
    %71 = vector.broadcast %cst_25 : f32 to vector<32x256xf32>
    %72 = arith.mulf %71, %70 : vector<32x256xf32>
    %cst_26 = arith.constant 5.000000e-01 : f32
    %73 = vector.broadcast %cst_26 : f32 to vector<32x256xf32>
    %74 = arith.addf %72, %73 : vector<32x256xf32>
    %75 = vector.extract_strided_slice %58 {offsets = [64, 0], sizes = [32, 256], strides = [1, 1]} : vector<96x256xf32> to vector<32x256xf32>
    %76 = math.tanh %75 : vector<32x256xf32>
    %77 = arith.mulf %66, %76 : vector<32x256xf32>
    %78 = math.tanh %77 : vector<32x256xf32>
    %79 = arith.mulf %74, %78 : vector<32x256xf32>
    %c0_27 = arith.constant 0 : index
    %c0_28 = arith.constant 0 : index
    %80 = vector.load %arg7[%c0_27, %c0_28] : memref<32x256xf32, #tpu.memory_space<vmem>>, vector<32x256xf32>
    tpu.vector_store %arg7[%c0_27, %c0_28], %79 {strides = array<i32>} : memref<32x256xf32, #tpu.memory_space<vmem>>, vector<32x256xf32>,
    return
  }
  func.func @transform_0(%arg0: i32) -> (i32, i32) {
    %c0_i32 = arith.constant 0 : i32
    %c0_i32_0 = arith.constant 0 : i32
    %c0_i32_1 = arith.constant 0 : i32
    return %c0_i32, %c0_i32_0 : i32, i32
  }
  func.func @transform_1(%arg0: i32) -> (i32, i32) {
    %c0_i32 = arith.constant 0 : i32
    %c0_i32_0 = arith.constant 0 : i32
    %c0_i32_1 = arith.constant 0 : i32
    return %c0_i32, %c0_i32_0 : i32, i32
  }
  func.func @transform_2(%arg0: i32) -> (i32, i32) {
    %c0_i32 = arith.constant 0 : i32
    %c0_i32_0 = arith.constant 0 : i32
    %c0_i32_1 = arith.constant 0 : i32
    return %c0_i32, %c0_i32_0 : i32, i32
  }
  func.func @transform_3(%arg0: i32) -> (i32, i32) {
    %c0_i32 = arith.constant 0 : i32
    %c0_i32_0 = arith.constant 0 : i32
    %c0_i32_1 = arith.constant 0 : i32
    return %c0_i32, %c0_i32_0 : i32, i32
  }
  func.func @transform_4(%arg0: i32) -> (i32, i32) {
    %c0_i32 = arith.constant 0 : i32
    %c0_i32_0 = arith.constant 0 : i32
    %c0_i32_1 = arith.constant 0 : i32
    return %c0_i32, %c0_i32_0 : i32, i32
  }
  func.func @transform_5(%arg0: i32) -> (i32, i32) {
    %c0_i32 = arith.constant 0 : i32
    %c0_i32_0 = arith.constant 0 : i32
    %c0_i32_1 = arith.constant 0 : i32
    return %c0_i32, %c0_i32_0 : i32, i32
  }
  func.func @transform_6(%arg0: i32) -> (i32, i32) {
    %c0_i32 = arith.constant 0 : i32
    %c0_i32_0 = arith.constant 0 : i32
    return %c0_i32, %arg0 : i32, i32
  }
}

</mosaic_0001>

<llo_original>
// kernel: recurrent_conv_forward.1
$region0: #{recurrent_conv_forward.1}
  #allocation0 [shape = 'u32[]', space=smem, size = 0x4, offset = 0x4, fixed_abs, tag = 'smem constant byte address 0x4 - core index']
  #allocation1 [shape = 'u32[144,128]{1,0:T(1,128)}', space=vmem, size = 0x12000, scoped, tag = 'internal scratch']
  %s0 = inlined_call_operand.vmem [shape: bf16[48,640], index: 0, kind: input, shape index: {}]
  %s1 = inlined_call_operand.vmem [shape: f32[1,640], index: 1, kind: input, shape index: {}]
  %s2 = inlined_call_operand.vmem [shape: bf16[32,48], index: 2, kind: input, shape index: {}]
  %s3 = inlined_call_operand.vmem [shape: f32[32,1], index: 3, kind: input, shape index: {}]
  %s4 = inlined_call_operand.vmem [shape: bf16[96,288], index: 4, kind: input, shape index: {}]
  %s5 = inlined_call_operand.vmem [shape: f32[96,1], index: 5, kind: input, shape index: {}]
  %s6 = inlined_call_operand.vmem [shape: f32[32,512], index: 6, kind: output, shape index: {}]
  %s7 = sld [smem:[#allocation0]]
  $region76: #{recurrent_conv_forward.1} parent=0
    _
  %s9 = ssub.s32 1, %s7
  %s10 = scalar_select 0, %s9, %s7
  $region1: #{recurrent_conv_forward.1} parent=0
    #allocation2 [shape = 'u8[65536]{0}', space=vmem, size = 0x10000, scoped, tag = 'output window, operand 0']
    loop: start=0, step=1, limit=4
    $region2: #{recurrent_conv_forward.1} parent=1 // loop_pre_header
      _
    $region3: #{recurrent_conv_forward.1} parent=1 // loop_header
      %s12 = sphi 0, %s16
      %p13 = scmp.ge.s32.totalorder %s12, 4
      %s20 = sphi 0, %s20
      %s22 = sphi 0, %s20
      %s23 = sphi 0, %s22
      %s37 = sphi 0, %s23
      %s41 = sphi 0, %s41
      %s43 = sphi 0, %s41
      %s44 = sphi 0, %s43
      %s58 = sphi 0, %s44
      %s62 = sphi 0, %s62
      %s64 = sphi 0, %s62
      %s65 = sphi 0, %s64
      %s79 = sphi 0, %s65
      %s83 = sphi 0, %s83
      %s85 = sphi 0, %s83
      %s86 = sphi 0, %s85
      %s100 = sphi 0, %s86
      %s104 = sphi 0, %s104
      %s106 = sphi 0, %s104
      %s107 = sphi 0, %s106
      %s121 = sphi 0, %s107
      %s125 = sphi 0, %s125
      %s127 = sphi 0, %s125
      %s128 = sphi 0, %s127
      %s142 = sphi 0, %s128
      %s148 = sphi 0, %s150
      %s151 = sphi 0, %s148
      %s152 = sphi 0, %s151
      %s168 = sphi 0, %s152
    $region4: #{recurrent_conv_forward.1} parent=1 // loop_header_branch
      %15 = sbr.rel (%p13) target = $region8
    $region5: #{recurrent_conv_forward.1} parent=1 // loop_body
      %s17 = ssub.s32 %s12, 1
      %s18 = ssub.s32 %s12, 2
      %s19 = sadd.s32 %s12, 1
      %s21 = sadd.s32 %s20, 1
      %p24 = scmp.eq.s32.totalorder %s12, 1
      %p25 = scmp.ne.s32.totalorder %s20, %s22
      %p26 = scmp.eq.s32.totalorder %s12, 0
      %p27 = por %p25, %p26
      %p28 = scmp.ne.s32.totalorder %s20, %s22
      %p29 = scmp.eq.s32.totalorder %s17, 1
      %p30 = por %p28, %p29
      %p31 = scmp.ne.s32.totalorder %s22, %s23
      %p32 = scmp.eq.s32.totalorder %s17, 0
      %p33 = por %p31, %p32
      %p34 = scmp.ne.s32.totalorder %s22, %s23
      %p35 = scmp.eq.s32.totalorder %s18, 1
      %p36 = por %p34, %p35
      %p38 = scmp.ne.s32.totalorder %s23, %s37
      %p39 = scmp.eq.s32.totalorder %s18, 0
      %p40 = por %p38, %p39
      %s42 = sadd.s32 %s41, 1
      %p45 = scmp.eq.s32.totalorder %s12, 1
      %p46 = scmp.ne.s32.totalorder %s41, %s43
      %p47 = scmp.eq.s32.totalorder %s12, 0
      %p48 = por %p46, %p47
      %p49 = scmp.ne.s32.totalorder %s41, %s43
      %p50 = scmp.eq.s32.totalorder %s17, 1
      %p51 = por %p49, %p50
      %p52 = scmp.ne.s32.totalorder %s43, %s44
      %p53 = scmp.eq.s32.totalorder %s17, 0
      %p54 = por %p52, %p53
      %p55 = scmp.ne.s32.totalorder %s43, %s44
      %p56 = scmp.eq.s32.totalorder %s18, 1
      %p57 = por %p55, %p56
      %p59 = scmp.ne.s32.totalorder %s44, %s58
      %p60 = scmp.eq.s32.totalorder %s18, 0
      %p61 = por %p59, %p60
      %s63 = sadd.s32 %s62, 1
      %p66 = scmp.eq.s32.totalorder %s12, 1
      %p67 = scmp.ne.s32.totalorder %s62, %s64
      %p68 = scmp.eq.s32.totalorder %s12, 0
      %p69 = por %p67, %p68
      %p70 = scmp.ne.s32.totalorder %s62, %s64
      %p71 = scmp.eq.s32.totalorder %s17, 1
      %p72 = por %p70, %p71
      %p73 = scmp.ne.s32.totalorder %s64, %s65
      %p74 = scmp.eq.s32.totalorder %s17, 0
      %p75 = por %p73, %p74
      %p76 = scmp.ne.s32.totalorder %s64, %s65
      %p77 = scmp.eq.s32.totalorder %s18, 1
      %p78 = por %p76, %p77
      %p80 = scmp.ne.s32.totalorder %s65, %s79
      %p81 = scmp.eq.s32.totalorder %s18, 0
      %p82 = por %p80, %p81
      %s84 = sadd.s32 %s83, 1
      %p87 = scmp.eq.s32.totalorder %s12, 1
      %p88 = scmp.ne.s32.totalorder %s83, %s85
      %p89 = scmp.eq.s32.totalorder %s12, 0
      %p90 = por %p88, %p89
      %p91 = scmp.ne.s32.totalorder %s83, %s85
      %p92 = scmp.eq.s32.totalorder %s17, 1
      %p93 = por %p91, %p92
      %p94 = scmp.ne.s32.totalorder %s85, %s86
      %p95 = scmp.eq.s32.totalorder %s17, 0
      %p96 = por %p94, %p95
      %p97 = scmp.ne.s32.totalorder %s85, %s86
      %p98 = scmp.eq.s32.totalorder %s18, 1
      %p99 = por %p97, %p98
      %p101 = scmp.ne.s32.totalorder %s86, %s100
      %p102 = scmp.eq.s32.totalorder %s18, 0
      %p103 = por %p101, %p102
      %s105 = sadd.s32 %s104, 1
      %p108 = scmp.eq.s32.totalorder %s12, 1
      %p109 = scmp.ne.s32.totalorder %s104, %s106
      %p110 = scmp.eq.s32.totalorder %s12, 0
      %p111 = por %p109, %p110
      %p112 = scmp.ne.s32.totalorder %s104, %s106
      %p113 = scmp.eq.s32.totalorder %s17, 1
      %p114 = por %p112, %p113
      %p115 = scmp.ne.s32.totalorder %s106, %s107
      %p116 = scmp.eq.s32.totalorder %s17, 0
      %p117 = por %p115, %p116
      %p118 = scmp.ne.s32.totalorder %s106, %s107
      %p119 = scmp.eq.s32.totalorder %s18, 1
      %p120 = por %p118, %p119
      %p122 = scmp.ne.s32.totalorder %s107, %s121
      %p123 = scmp.eq.s32.totalorder %s18, 0
      %p124 = por %p122, %p123
      %s126 = sadd.s32 %s125, 1
      %p129 = scmp.eq.s32.totalorder %s12, 1
      %p130 = scmp.ne.s32.totalorder %s125, %s127
      %p131 = scmp.eq.s32.totalorder %s12, 0
      %p132 = por %p130, %p131
      %p133 = scmp.ne.s32.totalorder %s125, %s127
      %p134 = scmp.eq.s32.totalorder %s17, 1
      %p135 = por %p133, %p134
      %p136 = scmp.ne.s32.totalorder %s127, %s128
      %p137 = scmp.eq.s32.totalorder %s17, 0
      %p138 = por %p136, %p137
      %p139 = scmp.ne.s32.totalorder %s127, %s128
      %p140 = scmp.eq.s32.totalorder %s18, 1
      %p141 = por %p139, %p140
      %p143 = scmp.ne.s32.totalorder %s128, %s142
      %p144 = scmp.eq.s32.totalorder %s18, 0
      %p145 = por %p143, %p144
      %s146 = ssub.s32 %s12, %s19
      %p147 = scmp.eq.s32.totalorder %s146, 0
      %s149 = sadd.s32 %s148, 1
      %s150 = scalar_select %p147, %s148, %s149
      %p153 = pneg %p147
      %p154 = scmp.eq.s32.totalorder %s12, 1
      %p155 = por %p153, %p154
      %p156 = scmp.ne.s32.totalorder %s148, %s151
      %p157 = scmp.eq.s32.totalorder %s12, 0
      %p158 = por %p156, %p157
      %p159 = scmp.ne.s32.totalorder %s148, %s151
      %p160 = scmp.eq.s32.totalorder %s17, 1
      %p161 = por %p159, %p160
      %p162 = scmp.ne.s32.totalorder %s151, %s152
      %p163 = scmp.eq.s32.totalorder %s17, 0
      %p164 = por %p162, %p163
      %p165 = scmp.ne.s32.totalorder %s151, %s152
      %p166 = scmp.eq.s32.totalorder %s18, 1
      %p167 = por %p165, %p166
      %p169 = scmp.ne.s32.totalorder %s152, %s168
      %p170 = scmp.eq.s32.totalorder %s18, 0
      %p171 = por %p169, %p170
      %p172 = scmp.le.s32.totalorder 1, %s12
      %p173 = scmp.lt.s32.totalorder %s12, 3
      %p174 = pnand %p172, %p173
      %p175 = pneg %p174
      // Predicated region
      $region9: #{recurrent_conv_forward.1} parent=5 // pred_check
        _
      $region10: #{recurrent_conv_forward.1} parent=5 // pred_check_branch
        %177 = sbr.rel (%p174) target = $region12
      $region11: #{recurrent_conv_forward.1} parent=5 // pred_region
        %s178 = ssub.s32 %s12, 1
        // Predicated region
        $region13: #{recurrent_conv_forward.1} parent=11 // pred_check
          %p179 = pneg %p33
        $region14: #{recurrent_conv_forward.1} parent=11 // pred_check_branch
          %181 = sbr.rel (%p179) target = $region16
        $region15: #{recurrent_conv_forward.1} parent=11 // pred_region
          _
        $region16: #{recurrent_conv_forward.1} parent=11 // pred_fallthru
          _
        // Predicated region
        $region17: #{recurrent_conv_forward.1} parent=11 // pred_check
          %p182 = pneg %p54
        $region18: #{recurrent_conv_forward.1} parent=11 // pred_check_branch
          %184 = sbr.rel (%p182) target = $region20
        $region19: #{recurrent_conv_forward.1} parent=11 // pred_region
          _
        $region20: #{recurrent_conv_forward.1} parent=11 // pred_fallthru
          _
        // Predicated region
        $region21: #{recurrent_conv_forward.1} parent=11 // pred_check
          %p185 = pneg %p75
        $region22: #{recurrent_conv_forward.1} parent=11 // pred_check_branch
          %187 = sbr.rel (%p185) target = $region24
        $region23: #{recurrent_conv_forward.1} parent=11 // pred_region
          _
        $region24: #{recurrent_conv_forward.1} parent=11 // pred_fallthru
          _
        // Predicated region
        $region25: #{recurrent_conv_forward.1} parent=11 // pred_check
          %p188 = pneg %p96
        $region26: #{recurrent_conv_forward.1} parent=11 // pred_check_branch
          %190 = sbr.rel (%p188) target = $region28
        $region27: #{recurrent_conv_forward.1} parent=11 // pred_region
          _
        $region28: #{recurrent_conv_forward.1} parent=11 // pred_fallthru
          _
        // Predicated region
        $region29: #{recurrent_conv_forward.1} parent=11 // pred_check
          %p191 = pneg %p117
        $region30: #{recurrent_conv_forward.1} parent=11 // pred_check_branch
          %193 = sbr.rel (%p191) target = $region32
        $region31: #{recurrent_conv_forward.1} parent=11 // pred_region
          _
        $region32: #{recurrent_conv_forward.1} parent=11 // pred_fallthru
          _
        // Predicated region
        $region33: #{recurrent_conv_forward.1} parent=11 // pred_check
          %p194 = pneg %p138
        $region34: #{recurrent_conv_forward.1} parent=11 // pred_check_branch
          %196 = sbr.rel (%p194) target = $region36
        $region35: #{recurrent_conv_forward.1} parent=11 // pred_region
          _
        $region36: #{recurrent_conv_forward.1} parent=11 // pred_fallthru
          _
      $region12: #{recurrent_conv_forward.1} parent=5 // pred_fallthru
        _
      %p197 = scmp.lt.s32.totalorder %s12, 2
      // Predicated region
      $region37: #{recurrent_conv_forward.1} parent=5 // pred_check
        %p198 = pneg %p197
      $region38: #{recurrent_conv_forward.1} parent=5 // pred_check_branch
        %200 = sbr.rel (%p198) target = $region40
      $region39: #{recurrent_conv_forward.1} parent=5 // pred_region
        _
      $region40: #{recurrent_conv_forward.1} parent=5 // pred_fallthru
        _
      %p201 = scmp.le.s32.totalorder 1, %s12
      %p202 = scmp.lt.s32.totalorder %s12, 3
      %p203 = pnand %p201, %p202
      %p204 = pneg %p203
      // Predicated region
      $region41: #{recurrent_conv_forward.1} parent=5 // pred_check
        _
      $region42: #{recurrent_conv_forward.1} parent=5 // pred_check_branch
        %206 = sbr.rel (%p203) target = $region44
      $region43: #{recurrent_conv_forward.1} parent=5 // pred_region
        %s207 = ssub.s32 %s12, 1
        %p208 = pneg %p33
        %p209 = pneg %p30
        %p210 = pneg %p54
        %p211 = pneg %p51
        %p212 = pneg %p75
        %p213 = pneg %p72
        %p214 = pneg %p96
        %p215 = pneg %p93
        %p216 = pneg %p117
        %p217 = pneg %p114
        %p218 = pneg %p138
        %p219 = pneg %p135
        %p220 = pneg %p164
        %p221 = pneg %p161
        %s222 = sand.u32 %s151, 1
        %s223 = sand.u32 %s151, 1
        %s224 = smul.addr %s223, 64
        %s225 = scalar_lea.vmem [#allocation2], %s224
        %s226 = smul.u32 2, %s17
        %s228 = smul.u32 %s17, 256
        %v229 = vld [vmem:[%s2] sm:$0xf]
        %v230 = vld [vmem:[%s2 + $0x4] sm:$0xf]
        %v231 = vld [vmem:[%s2 + $0x8] sm:$0xf]
        %v232 = vld [vmem:[%s2 + $0xc] sm:$0xf]
        %s233 = sshra.s32 %s228, 7
        %s234 = sand.u32 %s228, 127
        %s235 = smul.addr %s233, 4
        %s236 = scalar_lea.vmem %s0, %s235
        %v237 = vld [vmem:[%s236] sm:$0xff]
        %v238 = vld [vmem:[%s236 + $0x8] sm:$0xf]
        %v239 = vld [vmem:[%s236 + $0x14] sm:$0xff]
        %v240 = vld [vmem:[%s236 + $0x1c] sm:$0xf]
        %v241 = vld [vmem:[%s236 + $0x28] sm:$0xff]
        %v242 = vld [vmem:[%s236 + $0x30] sm:$0xf]
        %v243 = vld [vmem:[%s236 + $0x3c] sm:$0xff]
        %v244 = vld [vmem:[%s236 + $0x44] sm:$0xf]
        %v245 = vld [vmem:[%s236 + $0x50] sm:$0xff]
        %v246 = vld [vmem:[%s236 + $0x58] sm:$0xf]
        %v247 = vld [vmem:[%s236 + $0x64] sm:$0xff]
        %v248 = vld [vmem:[%s236 + $0x6c] sm:$0xf]
        %v249 = vld [vmem:[%s3] sm:$0xff]
        %v250 = vld [vmem:[%s3 + $0x8] sm:$0xff]
        %v251 = vld [vmem:[%s3 + $0x10] sm:$0xff]
        %v252 = vld [vmem:[%s3 + $0x18] sm:$0xff]
        %254 = vset.pattern.permute.xlu0 0
        %255 = vperm.xlu0 %254, %v249
        %v256 = vpop.permute.xlu0 %255
        %259 = vset.pattern.permute.xlu0 0
        %260 = vperm.xlu0 %259, %v250
        %v261 = vpop.permute.xlu0 %260
        %264 = vset.pattern.permute.xlu0 0
        %265 = vperm.xlu0 %264, %v251
        %v266 = vpop.permute.xlu0 %265
        %269 = vset.pattern.permute.xlu0 0
        %270 = vperm.xlu0 %269, %v252
        %v271 = vpop.permute.xlu0 %270
        %v277 = vunpack.c.l.b16 %v229
        %v278 = vunpack.c.l.b16 %v230
        %v279 = vunpack.c.l.b16 %v231
        %v280 = vunpack.c.l.b16 %v232
        %v281 = vpack.c.b16 %v278, %v277
        %v282 = vpack.c.b16 %v280, %v279
        %v295 = vunpack.c.l.b16 %v237
        %v296 = vunpack.c.h.b16 %v237
        %v297 = vunpack.c.l.b16 %v238
        %v298 = vunpack.c.l.b16 %v239
        %v299 = vunpack.c.h.b16 %v239
        %v300 = vunpack.c.l.b16 %v240
        %v301 = vunpack.c.l.b16 %v241
        %v302 = vunpack.c.h.b16 %v241
        %v303 = vunpack.c.l.b16 %v242
        %v304 = vunpack.c.l.b16 %v243
        %v305 = vunpack.c.h.b16 %v243
        %v306 = vunpack.c.l.b16 %v244
        %v307 = vunpack.c.l.b16 %v245
        %v308 = vunpack.c.h.b16 %v245
        %v309 = vunpack.c.l.b16 %v246
        %v310 = vunpack.c.l.b16 %v247
        %v311 = vunpack.c.h.b16 %v247
        %v312 = vunpack.c.l.b16 %v248
        %v313 = vpack.c.b16 %v298, %v295
        %v314 = vpack.c.b16 %v299, %v296
        %v315 = vpack.c.b16 %v300, %v297
        %v316 = vpack.c.b16 %v304, %v301
        %v317 = vpack.c.b16 %v305, %v302
        %v318 = vpack.c.b16 %v306, %v303
        %v319 = vpack.c.b16 %v310, %v307
        %v320 = vpack.c.b16 %v311, %v308
        %v321 = vpack.c.b16 %v312, %v309
        %vm331 = vcmask 392192
        %v333 = vsel %vm331, %v281, 0
        %v336 = vsel %vm331, %v282, 0
        %338 = vmatprep.subr.bf16.mxu0 0
        %339 = vmatpush1.bf16.msra.mxu0 0
        %340 = vmatprep.subr.bf16.mxu0 0
        %341 = vmatpush1.bf16.msra.mxu0 0
        %342 = vmatprep.subr.bf16.mxu0 0
        %343 = vmatpush1.bf16.msra.mxu0 0
        %344 = vmatprep.subr.bf16.mxu0 0
        %345 = vmatpush1.bf16.msra.mxu0 0
        %346 = vmatprep.subr.bf16.mxu0 0
        %347 = vmatpush1.bf16.msra.mxu0 0
        %348 = vmatprep.subr.bf16.mxu0 %v320
        %349 = vmatpush1.bf16.msra.mxu0 %v319
        %350 = vmatprep.subr.bf16.mxu0 %v317
        %351 = vmatpush1.bf16.msra.mxu0 %v316
        %352 = vmatprep.subr.bf16.mxu0 %v314
        %353 = vmatpush1.bf16.msra.mxu0 %v313
        %354 = vmatprep.subr.bf16.mxu0 0
        %355 = vmatpush2.bf16.msra.mxu0 0
        %356 = vmatprep.subr.bf16.mxu0 0
        %357 = vmatpush2.bf16.msra.mxu0 0
        %358 = vmatprep.subr.bf16.mxu0 0
        %359 = vmatpush2.bf16.msra.mxu0 0
        %360 = vmatprep.subr.bf16.mxu0 0
        %361 = vmatpush2.bf16.msra.mxu0 0
        %362 = vmatprep.subr.bf16.mxu0 0
        %363 = vmatpush2.bf16.msra.mxu0 0
        %364 = vmatprep.subr.bf16.mxu0 0
        %365 = vmatpush2.bf16.msra.mxu0 0
        %366 = vmatprep.subr.bf16.mxu0 0
        %367 = vmatpush2.bf16.msra.mxu0 0
        %368 = vmatprep.subr.bf16.mxu0 0
        %369 = vmatpush2.bf16.msra.mxu0 0
        %370 = vmatprep.mubr.bf16.mxu0 0
        %371 = vmatmul.mubr.bf16.gmra.mxu0 %v333
        %v372 = vpop.f32.mrf.mxu0
        %v373 = vadd.f32 %v256, %v372
        %v374 = vpop.f32.mrf.mxu0
        %v375 = vadd.f32 %v256, %v374
        %v376 = vpop.f32.mrf.mxu0
        %v377 = vadd.f32 %v261, %v376
        %v378 = vpop.f32.mrf.mxu0
        %v379 = vadd.f32 %v261, %v378
        %380 = vmatprep.mubr.bf16.mxu0 0
        %381 = vmatmul.mubr.bf16.gmra.mxu0 %v336
        %v382 = vpop.f32.mrf.mxu0
        %v383 = vadd.f32 %v266, %v382
        %v384 = vpop.f32.mrf.mxu0
        %v385 = vadd.f32 %v266, %v384
        %v386 = vpop.f32.mrf.mxu0
        %v387 = vadd.f32 %v271, %v386
        %v388 = vpop.f32.mrf.mxu0
        %v389 = vadd.f32 %v271, %v388
        %390 = vdwg.mxu0
        %391 = vmatprep.subr.bf16.mxu0 0
        %392 = vmatpush1.bf16.msra.mxu0 0
        %393 = vmatprep.subr.bf16.mxu0 0
        %394 = vmatpush1.bf16.msra.mxu0 0
        %395 = vmatprep.subr.bf16.mxu0 0
        %396 = vmatpush1.bf16.msra.mxu0 0
        %397 = vmatprep.subr.bf16.mxu0 0
        %398 = vmatpush1.bf16.msra.mxu0 0
        %399 = vmatprep.subr.bf16.mxu0 0
        %400 = vmatpush1.bf16.msra.mxu0 0
        %401 = vmatprep.subr.bf16.mxu0 0
        %402 = vmatpush1.bf16.msra.mxu0 %v321
        %403 = vmatprep.subr.bf16.mxu0 0
        %404 = vmatpush1.bf16.msra.mxu0 %v318
        %405 = vmatprep.subr.bf16.mxu0 0
        %406 = vmatpush1.bf16.msra.mxu0 %v315
        %407 = vmatprep.subr.bf16.mxu0 0
        %408 = vmatpush2.bf16.msra.mxu0 0
        %409 = vmatprep.subr.bf16.mxu0 0
        %410 = vmatpush2.bf16.msra.mxu0 0
        %411 = vmatprep.subr.bf16.mxu0 0
        %412 = vmatpush2.bf16.msra.mxu0 0
        %413 = vmatprep.subr.bf16.mxu0 0
        %414 = vmatpush2.bf16.msra.mxu0 0
        %415 = vmatprep.subr.bf16.mxu0 0
        %416 = vmatpush2.bf16.msra.mxu0 0
        %417 = vmatprep.subr.bf16.mxu0 0
        %418 = vmatpush2.bf16.msra.mxu0 0
        %419 = vmatprep.subr.bf16.mxu0 0
        %420 = vmatpush2.bf16.msra.mxu0 0
        %421 = vmatprep.subr.bf16.mxu0 0
        %422 = vmatpush2.bf16.msra.mxu0 0
        %423 = vmatprep.mubr.bf16.mxu0 0
        %424 = vmatmul.mubr.bf16.gmra.mxu0 %v333
        %v425 = vpop.f32.mrf.mxu0
        %v426 = vadd.f32 %v256, %v425
        %v427 = vpop.f32.mrf.mxu0
        %v428 = vpop.f32.mrf.mxu0
        %v429 = vadd.f32 %v261, %v428
        %v430 = vpop.f32.mrf.mxu0
        %431 = vmatprep.mubr.bf16.mxu0 0
        %432 = vmatmul.mubr.bf16.gmra.mxu0 %v336
        %v433 = vpop.f32.mrf.mxu0
        %v434 = vadd.f32 %v266, %v433
        %v435 = vpop.f32.mrf.mxu0
        %v436 = vpop.f32.mrf.mxu0
        %v437 = vadd.f32 %v271, %v436
        %v438 = vpop.f32.mrf.mxu0
        %439 = vdwg.mxu0
        %v440 = vmax.f32 %v373, 0.0
        %v441 = vmax.f32 %v375, 0.0
        %v442 = vmax.f32 %v426, 0.0
        %v443 = vmax.f32 %v377, 0.0
        %v444 = vmax.f32 %v379, 0.0
        %v445 = vmax.f32 %v429, 0.0
        %v446 = vmax.f32 %v383, 0.0
        %v447 = vmax.f32 %v385, 0.0
        %v448 = vmax.f32 %v434, 0.0
        %v449 = vmax.f32 %v387, 0.0
        %v450 = vmax.f32 %v389, 0.0
        %v451 = vmax.f32 %v437, 0.0
        %v452 = vmin.f32 %v440, 6.0
        %v453 = vmin.f32 %v441, 6.0
        %v454 = vmin.f32 %v442, 6.0
        %v455 = vmin.f32 %v443, 6.0
        %v456 = vmin.f32 %v444, 6.0
        %v457 = vmin.f32 %v445, 6.0
        %v458 = vmin.f32 %v446, 6.0
        %v459 = vmin.f32 %v447, 6.0
        %v460 = vmin.f32 %v448, 6.0
        %v461 = vmin.f32 %v449, 6.0
        %v462 = vmin.f32 %v450, 6.0
        %v463 = vmin.f32 %v451, 6.0
        %s464 = scalar_lea.vmem %s1, %s233
        %v465 = vld [vmem:[%s464] sm:$0x7]
        %v467 = vlaneseq
        %v468 = vshrl.u32 %v467, 7
        %v469 = vsub.s32 0, %v468
        %v470 = vrot.slane %v465, %v469
        %v471 = vlaneseq
        %v472 = vshrl.u32 %v471, 7
        %v473 = vsub.s32 1, %v472
        %v474 = vrot.slane %v465, %v473
        %v475 = vlaneseq
        %v476 = vshrl.u32 %v475, 7
        %v477 = vsub.s32 2, %v476
        %v478 = vrot.slane %v465, %v477
        %v482 = vmul.f32 %v452, %v470
        %v483 = vmul.f32 %v453, %v474
        %v484 = vmul.f32 %v454, %v478
        %v485 = vmul.f32 %v455, %v470
        %v486 = vmul.f32 %v456, %v474
        %v487 = vmul.f32 %v457, %v478
        %v488 = vmul.f32 %v458, %v470
        %v489 = vmul.f32 %v459, %v474
        %v490 = vmul.f32 %v460, %v478
        %v491 = vmul.f32 %v461, %v470
        %v492 = vmul.f32 %v462, %v474
        %v493 = vmul.f32 %v463, %v478
        %v494 = vpack.c.bf16 %v485, %v482
        %v495 = vpack.c.bf16 %v486, %v483
        %v496 = vpack.c.bf16 %v487, %v484
        %v497 = vpack.c.bf16 %v491, %v488
        %v498 = vpack.c.bf16 %v492, %v489
        %v499 = vpack.c.bf16 %v493, %v490
        %v500 = vld [vmem:[%s4] sm:$0xff]
        %v501 = vld [vmem:[%s4 + $0x8] sm:$0xf]
        %v502 = vld [vmem:[%s4 + $0xc] sm:$0xff]
        %v503 = vld [vmem:[%s4 + $0x14] sm:$0xf]
        %v504 = vld [vmem:[%s4 + $0x18] sm:$0xff]
        %v505 = vld [vmem:[%s4 + $0x20] sm:$0xf]
        %v506 = vld [vmem:[%s4 + $0x24] sm:$0xff]
        %v507 = vld [vmem:[%s4 + $0x2c] sm:$0xf]
        %v508 = vld [vmem:[%s4 + $0x30] sm:$0xff]
        %v509 = vld [vmem:[%s4 + $0x38] sm:$0xf]
        %v510 = vld [vmem:[%s4 + $0x3c] sm:$0xff]
        %v511 = vld [vmem:[%s4 + $0x44] sm:$0xf]
        %v512 = vld [vmem:[%s4 + $0x48] sm:$0xff]
        %v513 = vld [vmem:[%s4 + $0x50] sm:$0xf]
        %v514 = vld [vmem:[%s4 + $0x54] sm:$0xff]
        %v515 = vld [vmem:[%s4 + $0x5c] sm:$0xf]
        %v516 = vld [vmem:[%s4 + $0x60] sm:$0xff]
        %v517 = vld [vmem:[%s4 + $0x68] sm:$0xf]
        %v518 = vld [vmem:[%s4 + $0x6c] sm:$0xff]
        %v519 = vld [vmem:[%s4 + $0x74] sm:$0xf]
        %v520 = vld [vmem:[%s4 + $0x78] sm:$0xff]
        %v521 = vld [vmem:[%s4 + $0x80] sm:$0xf]
        %v522 = vld [vmem:[%s4 + $0x84] sm:$0xff]
        %v523 = vld [vmem:[%s4 + $0x8c] sm:$0xf]
        %v536 = vunpack.c.l.b16 %v500
        %v537 = vunpack.c.l.b16 %v502
        %v538 = vunpack.c.l.b16 %v504
        %v539 = vunpack.c.l.b16 %v506
        %v540 = vunpack.c.l.b16 %v508
        %v541 = vunpack.c.l.b16 %v510
        %v542 = vunpack.c.l.b16 %v512
        %v543 = vunpack.c.l.b16 %v514
        %v544 = vunpack.c.l.b16 %v516
        %v545 = vunpack.c.l.b16 %v518
        %v546 = vunpack.c.l.b16 %v520
        %v547 = vunpack.c.l.b16 %v522
        %v548 = vpack.c.b16 %v537, %v536
        %v549 = vpack.c.b16 %v539, %v538
        %v550 = vpack.c.b16 %v541, %v540
        %v551 = vpack.c.b16 %v543, %v542
        %v552 = vpack.c.b16 %v545, %v544
        %v553 = vpack.c.b16 %v547, %v546
        %554 = vrot.lane.b32.xlu0 %v548, 96
        %v555 = vpop.permute.xlu0 %554
        %556 = vrot.lane.b32.xlu0 %v549, 96
        %v557 = vpop.permute.xlu0 %556
        %558 = vrot.lane.b32.xlu0 %v550, 96
        %v559 = vpop.permute.xlu0 %558
        %560 = vrot.lane.b32.xlu0 %v551, 96
        %v561 = vpop.permute.xlu0 %560
        %562 = vrot.lane.b32.xlu0 %v552, 96
        %v563 = vpop.permute.xlu0 %562
        %564 = vrot.lane.b32.xlu0 %v553, 96
        %v565 = vpop.permute.xlu0 %564
        %572 = vrot.lane.b32.xlu0 %v494, 112
        %v573 = vpop.permute.xlu0 %572
        %574 = vrot.lane.b32.xlu0 %v495, 112
        %v575 = vpop.permute.xlu0 %574
        %576 = vrot.lane.b32.xlu0 %v496, 112
        %v577 = vpop.permute.xlu0 %576
        %578 = vrot.lane.b32.xlu0 %v497, 112
        %v579 = vpop.permute.xlu0 %578
        %580 = vrot.lane.b32.xlu0 %v498, 112
        %v581 = vpop.permute.xlu0 %580
        %582 = vrot.lane.b32.xlu0 %v499, 112
        %v583 = vpop.permute.xlu0 %582
        %vm584 = vcmask 916480
        %v585 = vsel %vm584, %v573, %v575
        %v586 = vsel %vm584, %v575, %v577
        %v587 = vsel %vm584, %v579, %v581
        %v588 = vsel %vm584, %v581, %v583
        %vm593 = vcmask 261120
        %v595 = vsel %vm593, %v555, 0
        %v598 = vsel %vm593, %v557, 0
        %v601 = vsel %vm593, %v559, 0
        %v604 = vsel %vm593, %v561, 0
        %v607 = vsel %vm593, %v563, 0
        %v610 = vsel %vm593, %v565, 0
        %612 = vmatprep.subr.bf16.mxu0 0
        %613 = vmatpush1.bf16.msra.mxu0 0
        %614 = vmatprep.subr.bf16.mxu0 0
        %615 = vmatpush1.bf16.msra.mxu0 0
        %616 = vmatprep.subr.bf16.mxu0 0
        %617 = vmatpush1.bf16.msra.mxu0 0
        %618 = vmatprep.subr.bf16.mxu0 0
        %619 = vmatpush1.bf16.msra.mxu0 0
        %620 = vmatprep.subr.bf16.mxu0 0
        %621 = vmatpush1.bf16.msra.mxu0 0
        %622 = vmatprep.subr.bf16.mxu0 0
        %623 = vmatpush1.bf16.msra.mxu0 0
        %624 = vmatprep.subr.bf16.mxu0 %v588
        %625 = vmatpush1.bf16.msra.mxu0 %v587
        %626 = vmatprep.subr.bf16.mxu0 %v586
        %627 = vmatpush1.bf16.msra.mxu0 %v585
        %628 = vmatprep.subr.bf16.mxu0 0
        %629 = vmatpush2.bf16.msra.mxu0 0
        %630 = vmatprep.subr.bf16.mxu0 0
        %631 = vmatpush2.bf16.msra.mxu0 0
        %632 = vmatprep.subr.bf16.mxu0 0
        %633 = vmatpush2.bf16.msra.mxu0 0
        %634 = vmatprep.subr.bf16.mxu0 0
        %635 = vmatpush2.bf16.msra.mxu0 0
        %636 = vmatprep.subr.bf16.mxu0 0
        %637 = vmatpush2.bf16.msra.mxu0 0
        %638 = vmatprep.subr.bf16.mxu0 0
        %639 = vmatpush2.bf16.msra.mxu0 0
        %640 = vmatprep.subr.bf16.mxu0 0
        %641 = vmatpush2.bf16.msra.mxu0 0
        %642 = vmatprep.subr.bf16.mxu0 0
        %643 = vmatpush2.bf16.msra.mxu0 0
        %644 = vmatprep.mubr.bf16.mxu0 0
        %645 = vmatmul.mubr.bf16.gmra.mxu0 %v595
        %v646 = vpop.f32.mrf.mxu0
        %v647 = vadd.f32 0.0, %v646
        %v648 = vpop.f32.mrf.mxu0
        %v649 = vadd.f32 0.0, %v648
        %v650 = vpop.f32.mrf.mxu0
        %v651 = vadd.f32 0.0, %v650
        %v652 = vpop.f32.mrf.mxu0
        %v653 = vadd.f32 0.0, %v652
        %654 = vmatprep.mubr.bf16.mxu0 0
        %655 = vmatmul.mubr.bf16.gmra.mxu0 %v598
        %v656 = vpop.f32.mrf.mxu0
        %v657 = vadd.f32 0.0, %v656
        %v658 = vpop.f32.mrf.mxu0
        %v659 = vadd.f32 0.0, %v658
        %v660 = vpop.f32.mrf.mxu0
        %v661 = vadd.f32 0.0, %v660
        %v662 = vpop.f32.mrf.mxu0
        %v663 = vadd.f32 0.0, %v662
        %664 = vmatprep.mubr.bf16.mxu0 0
        %665 = vmatmul.mubr.bf16.gmra.mxu0 %v601
        %v666 = vpop.f32.mrf.mxu0
        %v667 = vadd.f32 0.0, %v666
        %v668 = vpop.f32.mrf.mxu0
        %v669 = vadd.f32 0.0, %v668
        %v670 = vpop.f32.mrf.mxu0
        %v671 = vadd.f32 0.0, %v670
        %v672 = vpop.f32.mrf.mxu0
        %v673 = vadd.f32 0.0, %v672
        %674 = vmatprep.mubr.bf16.mxu0 0
        %675 = vmatmul.mubr.bf16.gmra.mxu0 %v604
        %v676 = vpop.f32.mrf.mxu0
        %v677 = vadd.f32 0.0, %v676
        %v678 = vpop.f32.mrf.mxu0
        %v679 = vadd.f32 0.0, %v678
        %v680 = vpop.f32.mrf.mxu0
        %v681 = vadd.f32 0.0, %v680
        %v682 = vpop.f32.mrf.mxu0
        %v683 = vadd.f32 0.0, %v682
        %684 = vmatprep.mubr.bf16.mxu0 0
        %685 = vmatmul.mubr.bf16.gmra.mxu0 %v607
        %v686 = vpop.f32.mrf.mxu0
        %v687 = vadd.f32 0.0, %v686
        %v688 = vpop.f32.mrf.mxu0
        %v689 = vadd.f32 0.0, %v688
        %v690 = vpop.f32.mrf.mxu0
        %v691 = vadd.f32 0.0, %v690
        %v692 = vpop.f32.mrf.mxu0
        %v693 = vadd.f32 0.0, %v692
        %694 = vmatprep.mubr.bf16.mxu0 0
        %695 = vmatmul.mubr.bf16.gmra.mxu0 %v610
        %v696 = vpop.f32.mrf.mxu0
        %v697 = vadd.f32 0.0, %v696
        %v698 = vpop.f32.mrf.mxu0
        %v699 = vadd.f32 0.0, %v698
        %v700 = vpop.f32.mrf.mxu0
        %v701 = vadd.f32 0.0, %v700
        %v702 = vpop.f32.mrf.mxu0
        %v703 = vadd.f32 0.0, %v702
        %704 = vdwg.mxu0
        %705 = vrot.lane.b32.xlu0 %v494, 113
        %v706 = vpop.permute.xlu0 %705
        %707 = vrot.lane.b32.xlu0 %v495, 113
        %v708 = vpop.permute.xlu0 %707
        %709 = vrot.lane.b32.xlu0 %v496, 113
        %v710 = vpop.permute.xlu0 %709
        %711 = vrot.lane.b32.xlu0 %v497, 113
        %v712 = vpop.permute.xlu0 %711
        %713 = vrot.lane.b32.xlu0 %v498, 113
        %v714 = vpop.permute.xlu0 %713
        %715 = vrot.lane.b32.xlu0 %v499, 113
        %v716 = vpop.permute.xlu0 %715
        %vm717 = vcmask 924672
        %v718 = vsel %vm717, %v706, %v708
        %v719 = vsel %vm717, %v708, %v710
        %v720 = vsel %vm717, %v712, %v714
        %v721 = vsel %vm717, %v714, %v716
        %v727 = vsel %vm593, %v548, 0
        %v730 = vsel %vm593, %v549, 0
        %v733 = vsel %vm593, %v550, 0
        %v736 = vsel %vm593, %v551, 0
        %v739 = vsel %vm593, %v552, 0
        %v742 = vsel %vm593, %v553, 0
        %744 = vmatprep.subr.bf16.mxu0 0
        %745 = vmatpush1.bf16.msra.mxu0 0
        %746 = vmatprep.subr.bf16.mxu0 0
        %747 = vmatpush1.bf16.msra.mxu0 0
        %748 = vmatprep.subr.bf16.mxu0 0
        %749 = vmatpush1.bf16.msra.mxu0 0
        %750 = vmatprep.subr.bf16.mxu0 0
        %751 = vmatpush1.bf16.msra.mxu0 0
        %752 = vmatprep.subr.bf16.mxu0 0
        %753 = vmatpush1.bf16.msra.mxu0 0
        %754 = vmatprep.subr.bf16.mxu0 0
        %755 = vmatpush1.bf16.msra.mxu0 0
        %756 = vmatprep.subr.bf16.mxu0 %v721
        %757 = vmatpush1.bf16.msra.mxu0 %v720
        %758 = vmatprep.subr.bf16.mxu0 %v719
        %759 = vmatpush1.bf16.msra.mxu0 %v718
        %760 = vmatprep.subr.bf16.mxu0 0
        %761 = vmatpush2.bf16.msra.mxu0 0
        %762 = vmatprep.subr.bf16.mxu0 0
        %763 = vmatpush2.bf16.msra.mxu0 0
        %764 = vmatprep.subr.bf16.mxu0 0
        %765 = vmatpush2.bf16.msra.mxu0 0
        %766 = vmatprep.subr.bf16.mxu0 0
        %767 = vmatpush2.bf16.msra.mxu0 0
        %768 = vmatprep.subr.bf16.mxu0 0
        %769 = vmatpush2.bf16.msra.mxu0 0
        %770 = vmatprep.subr.bf16.mxu0 0
        %771 = vmatpush2.bf16.msra.mxu0 0
        %772 = vmatprep.subr.bf16.mxu0 0
        %773 = vmatpush2.bf16.msra.mxu0 0
        %774 = vmatprep.subr.bf16.mxu0 0
        %775 = vmatpush2.bf16.msra.mxu0 0
        %776 = vmatprep.mubr.bf16.mxu0 0
        %777 = vmatmul.mubr.bf16.gmra.mxu0 %v727
        %v778 = vpop.f32.mrf.mxu0
        %v779 = vadd.f32 %v647, %v778
        %v780 = vpop.f32.mrf.mxu0
        %v781 = vadd.f32 %v649, %v780
        %v782 = vpop.f32.mrf.mxu0
        %v783 = vadd.f32 %v651, %v782
        %v784 = vpop.f32.mrf.mxu0
        %v785 = vadd.f32 %v653, %v784
        %786 = vmatprep.mubr.bf16.mxu0 0
        %787 = vmatmul.mubr.bf16.gmra.mxu0 %v730
        %v788 = vpop.f32.mrf.mxu0
        %v789 = vadd.f32 %v657, %v788
        %v790 = vpop.f32.mrf.mxu0
        %v791 = vadd.f32 %v659, %v790
        %v792 = vpop.f32.mrf.mxu0
        %v793 = vadd.f32 %v661, %v792
        %v794 = vpop.f32.mrf.mxu0
        %v795 = vadd.f32 %v663, %v794
        %796 = vmatprep.mubr.bf16.mxu0 0
        %797 = vmatmul.mubr.bf16.gmra.mxu0 %v733
        %v798 = vpop.f32.mrf.mxu0
        %v799 = vadd.f32 %v667, %v798
        %v800 = vpop.f32.mrf.mxu0
        %v801 = vadd.f32 %v669, %v800
        %v802 = vpop.f32.mrf.mxu0
        %v803 = vadd.f32 %v671, %v802
        %v804 = vpop.f32.mrf.mxu0
        %v805 = vadd.f32 %v673, %v804
        %806 = vmatprep.mubr.bf16.mxu0 0
        %807 = vmatmul.mubr.bf16.gmra.mxu0 %v736
        %v808 = vpop.f32.mrf.mxu0
        %v809 = vadd.f32 %v677, %v808
        %v810 = vpop.f32.mrf.mxu0
        %v811 = vadd.f32 %v679, %v810
        %v812 = vpop.f32.mrf.mxu0
        %v813 = vadd.f32 %v681, %v812
        %v814 = vpop.f32.mrf.mxu0
        %v815 = vadd.f32 %v683, %v814
        %816 = vmatprep.mubr.bf16.mxu0 0
        %817 = vmatmul.mubr.bf16.gmra.mxu0 %v739
        %v818 = vpop.f32.mrf.mxu0
        %v819 = vadd.f32 %v687, %v818
        %v820 = vpop.f32.mrf.mxu0
        %v821 = vadd.f32 %v689, %v820
        %v822 = vpop.f32.mrf.mxu0
        %v823 = vadd.f32 %v691, %v822
        %v824 = vpop.f32.mrf.mxu0
        %v825 = vadd.f32 %v693, %v824
        %826 = vmatprep.mubr.bf16.mxu0 0
        %827 = vmatmul.mubr.bf16.gmra.mxu0 %v742
        %v828 = vpop.f32.mrf.mxu0
        %v829 = vadd.f32 %v697, %v828
        %v830 = vpop.f32.mrf.mxu0
        %v831 = vadd.f32 %v699, %v830
        %v832 = vpop.f32.mrf.mxu0
        %v833 = vadd.f32 %v701, %v832
        %v834 = vpop.f32.mrf.mxu0
        %v835 = vadd.f32 %v703, %v834
        %836 = vdwg.mxu0
        %837 = vrot.lane.b32.xlu0 %v548, 64
        %v838 = vpop.permute.xlu0 %837
        %839 = vrot.lane.b32.xlu0 %v549, 64
        %v840 = vpop.permute.xlu0 %839
        %841 = vrot.lane.b32.xlu0 %v550, 64
        %v842 = vpop.permute.xlu0 %841
        %843 = vrot.lane.b32.xlu0 %v551, 64
        %v844 = vpop.permute.xlu0 %843
        %845 = vrot.lane.b32.xlu0 %v552, 64
        %v846 = vpop.permute.xlu0 %845
        %847 = vrot.lane.b32.xlu0 %v553, 64
        %v848 = vpop.permute.xlu0 %847
        %849 = vrot.lane.b32.xlu0 %v494, 111
        %v850 = vpop.permute.xlu0 %849
        %851 = vrot.lane.b32.xlu0 %v495, 111
        %v852 = vpop.permute.xlu0 %851
        %853 = vrot.lane.b32.xlu0 %v496, 111
        %v854 = vpop.permute.xlu0 %853
        %855 = vrot.lane.b32.xlu0 %v497, 111
        %v856 = vpop.permute.xlu0 %855
        %857 = vrot.lane.b32.xlu0 %v498, 111
        %v858 = vpop.permute.xlu0 %857
        %859 = vrot.lane.b32.xlu0 %v499, 111
        %v860 = vpop.permute.xlu0 %859
        %vm861 = vcmask 908288
        %v862 = vsel %vm861, %v850, %v852
        %v863 = vsel %vm861, %v852, %v854
        %v864 = vsel %vm861, %v856, %v858
        %v865 = vsel %vm861, %v858, %v860
        %v871 = vsel %vm593, %v838, 0
        %v874 = vsel %vm593, %v840, 0
        %v877 = vsel %vm593, %v842, 0
        %v880 = vsel %vm593, %v844, 0
        %v883 = vsel %vm593, %v846, 0
        %v886 = vsel %vm593, %v848, 0
        %888 = vmatprep.subr.bf16.mxu0 0
        %889 = vmatpush1.bf16.msra.mxu0 0
        %890 = vmatprep.subr.bf16.mxu0 0
        %891 = vmatpush1.bf16.msra.mxu0 0
        %892 = vmatprep.subr.bf16.mxu0 0
        %893 = vmatpush1.bf16.msra.mxu0 0
        %894 = vmatprep.subr.bf16.mxu0 0
        %895 = vmatpush1.bf16.msra.mxu0 0
        %896 = vmatprep.subr.bf16.mxu0 0
        %897 = vmatpush1.bf16.msra.mxu0 0
        %898 = vmatprep.subr.bf16.mxu0 0
        %899 = vmatpush1.bf16.msra.mxu0 0
        %900 = vmatprep.subr.bf16.mxu0 %v865
        %901 = vmatpush1.bf16.msra.mxu0 %v864
        %902 = vmatprep.subr.bf16.mxu0 %v863
        %903 = vmatpush1.bf16.msra.mxu0 %v862
        %904 = vmatprep.subr.bf16.mxu0 0
        %905 = vmatpush2.bf16.msra.mxu0 0
        %906 = vmatprep.subr.bf16.mxu0 0
        %907 = vmatpush2.bf16.msra.mxu0 0
        %908 = vmatprep.subr.bf16.mxu0 0
        %909 = vmatpush2.bf16.msra.mxu0 0
        %910 = vmatprep.subr.bf16.mxu0 0
        %911 = vmatpush2.bf16.msra.mxu0 0
        %912 = vmatprep.subr.bf16.mxu0 0
        %913 = vmatpush2.bf16.msra.mxu0 0
        %914 = vmatprep.subr.bf16.mxu0 0
        %915 = vmatpush2.bf16.msra.mxu0 0
        %916 = vmatprep.subr.bf16.mxu0 0
        %917 = vmatpush2.bf16.msra.mxu0 0
        %918 = vmatprep.subr.bf16.mxu0 0
        %919 = vmatpush2.bf16.msra.mxu0 0
        %920 = vmatprep.mubr.bf16.mxu0 0
        %921 = vmatmul.mubr.bf16.gmra.mxu0 %v871
        %v922 = vpop.f32.mrf.mxu0
        %v923 = vadd.f32 0.0, %v922
        %v924 = vpop.f32.mrf.mxu0
        %v925 = vadd.f32 0.0, %v924
        %v926 = vpop.f32.mrf.mxu0
        %v927 = vadd.f32 0.0, %v926
        %v928 = vpop.f32.mrf.mxu0
        %v929 = vadd.f32 0.0, %v928
        %930 = vmatprep.mubr.bf16.mxu0 0
        %931 = vmatmul.mubr.bf16.gmra.mxu0 %v874
        %v932 = vpop.f32.mrf.mxu0
        %v933 = vadd.f32 0.0, %v932
        %v934 = vpop.f32.mrf.mxu0
        %v935 = vadd.f32 0.0, %v934
        %v936 = vpop.f32.mrf.mxu0
        %v937 = vadd.f32 0.0, %v936
        %v938 = vpop.f32.mrf.mxu0
        %v939 = vadd.f32 0.0, %v938
        %940 = vmatprep.mubr.bf16.mxu0 0
        %941 = vmatmul.mubr.bf16.gmra.mxu0 %v877
        %v942 = vpop.f32.mrf.mxu0
        %v943 = vadd.f32 0.0, %v942
        %v944 = vpop.f32.mrf.mxu0
        %v945 = vadd.f32 0.0, %v944
        %v946 = vpop.f32.mrf.mxu0
        %v947 = vadd.f32 0.0, %v946
        %v948 = vpop.f32.mrf.mxu0
        %v949 = vadd.f32 0.0, %v948
        %950 = vmatprep.mubr.bf16.mxu0 0
        %951 = vmatmul.mubr.bf16.gmra.mxu0 %v880
        %v952 = vpop.f32.mrf.mxu0
        %v953 = vadd.f32 0.0, %v952
        %v954 = vpop.f32.mrf.mxu0
        %v955 = vadd.f32 0.0, %v954
        %v956 = vpop.f32.mrf.mxu0
        %v957 = vadd.f32 0.0, %v956
        %v958 = vpop.f32.mrf.mxu0
        %v959 = vadd.f32 0.0, %v958
        %960 = vmatprep.mubr.bf16.mxu0 0
        %961 = vmatmul.mubr.bf16.gmra.mxu0 %v883
        %v962 = vpop.f32.mrf.mxu0
        %v963 = vadd.f32 0.0, %v962
        %v964 = vpop.f32.mrf.mxu0
        %v965 = vadd.f32 0.0, %v964
        %v966 = vpop.f32.mrf.mxu0
        %v967 = vadd.f32 0.0, %v966
        %v968 = vpop.f32.mrf.mxu0
        %v969 = vadd.f32 0.0, %v968
        %970 = vmatprep.mubr.bf16.mxu0 0
        %971 = vmatmul.mubr.bf16.gmra.mxu0 %v886
        %v972 = vpop.f32.mrf.mxu0
        %v973 = vadd.f32 0.0, %v972
        %v974 = vpop.f32.mrf.mxu0
        %v975 = vadd.f32 0.0, %v974
        %v976 = vpop.f32.mrf.mxu0
        %v977 = vadd.f32 0.0, %v976
        %v978 = vpop.f32.mrf.mxu0
        %v979 = vadd.f32 0.0, %v978
        %980 = vdwg.mxu0
        %v981 = vadd.f32 %v779, %v923
        %v982 = vadd.f32 %v781, %v925
        %v983 = vadd.f32 %v783, %v927
        %v984 = vadd.f32 %v785, %v929
        %v985 = vadd.f32 %v789, %v933
        %v986 = vadd.f32 %v791, %v935
        %v987 = vadd.f32 %v793, %v937
        %v988 = vadd.f32 %v795, %v939
        %v989 = vadd.f32 %v799, %v943
        %v990 = vadd.f32 %v801, %v945
        %v991 = vadd.f32 %v803, %v947
        %v992 = vadd.f32 %v805, %v949
        %v993 = vadd.f32 %v809, %v953
        %v994 = vadd.f32 %v811, %v955
        %v995 = vadd.f32 %v813, %v957
        %v996 = vadd.f32 %v815, %v959
        %v997 = vadd.f32 %v819, %v963
        %v998 = vadd.f32 %v821, %v965
        %v999 = vadd.f32 %v823, %v967
        %v1000 = vadd.f32 %v825, %v969
        %v1001 = vadd.f32 %v829, %v973
        %v1002 = vadd.f32 %v831, %v975
        %v1003 = vadd.f32 %v833, %v977
        %v1004 = vadd.f32 %v835, %v979
        %1005 = vrot.lane.b32.xlu0 %v548, 32
        %v1006 = vpop.permute.xlu0 %1005
        %1007 = vrot.lane.b32.xlu0 %v549, 32
        %v1008 = vpop.permute.xlu0 %1007
        %1009 = vrot.lane.b32.xlu0 %v550, 32
        %v1010 = vpop.permute.xlu0 %1009
        %1011 = vrot.lane.b32.xlu0 %v551, 32
        %v1012 = vpop.permute.xlu0 %1011
        %1013 = vrot.lane.b32.xlu0 %v552, 32
        %v1014 = vpop.permute.xlu0 %1013
        %1015 = vrot.lane.b32.xlu0 %v553, 32
        %v1016 = vpop.permute.xlu0 %1015
        %1017 = vrot.lane.b32.xlu0 %v494, 97
        %v1018 = vpop.permute.xlu0 %1017
        %1019 = vrot.lane.b32.xlu0 %v495, 97
        %v1020 = vpop.permute.xlu0 %1019
        %1021 = vrot.lane.b32.xlu0 %v496, 97
        %v1022 = vpop.permute.xlu0 %1021
        %1023 = vrot.lane.b32.xlu0 %v497, 97
        %v1024 = vpop.permute.xlu0 %1023
        %1025 = vrot.lane.b32.xlu0 %v498, 97
        %v1026 = vpop.permute.xlu0 %1025
        %1027 = vrot.lane.b32.xlu0 %v499, 97
        %v1028 = vpop.permute.xlu0 %1027
        %vm1029 = vcmask 793600
        %v1030 = vsel %vm1029, %v1018, %v1020
        %v1031 = vsel %vm1029, %v1020, %v1022
        %v1032 = vsel %vm1029, %v1024, %v1026
        %v1033 = vsel %vm1029, %v1026, %v1028
        %v1039 = vsel %vm593, %v1006, 0
        %v1042 = vsel %vm593, %v1008, 0
        %v1045 = vsel %vm593, %v1010, 0
        %v1048 = vsel %vm593, %v1012, 0
        %v1051 = vsel %vm593, %v1014, 0
        %v1054 = vsel %vm593, %v1016, 0
        %1056 = vmatprep.subr.bf16.mxu0 0
        %1057 = vmatpush1.bf16.msra.mxu0 0
        %1058 = vmatprep.subr.bf16.mxu0 0
        %1059 = vmatpush1.bf16.msra.mxu0 0
        %1060 = vmatprep.subr.bf16.mxu0 0
        %1061 = vmatpush1.bf16.msra.mxu0 0
        %1062 = vmatprep.subr.bf16.mxu0 0
        %1063 = vmatpush1.bf16.msra.mxu0 0
        %1064 = vmatprep.subr.bf16.mxu0 0
        %1065 = vmatpush1.bf16.msra.mxu0 0
        %1066 = vmatprep.subr.bf16.mxu0 0
        %1067 = vmatpush1.bf16.msra.mxu0 0
        %1068 = vmatprep.subr.bf16.mxu0 %v1033
        %1069 = vmatpush1.bf16.msra.mxu0 %v1032
        %1070 = vmatprep.subr.bf16.mxu0 %v1031
        %1071 = vmatpush1.bf16.msra.mxu0 %v1030
        %1072 = vmatprep.subr.bf16.mxu0 0
        %1073 = vmatpush2.bf16.msra.mxu0 0
        %1074 = vmatprep.subr.bf16.mxu0 0
        %1075 = vmatpush2.bf16.msra.mxu0 0
        %1076 = vmatprep.subr.bf16.mxu0 0
        %1077 = vmatpush2.bf16.msra.mxu0 0
        %1078 = vmatprep.subr.bf16.mxu0 0
        %1079 = vmatpush2.bf16.msra.mxu0 0
        %1080 = vmatprep.subr.bf16.mxu0 0
        %1081 = vmatpush2.bf16.msra.mxu0 0
        %1082 = vmatprep.subr.bf16.mxu0 0
        %1083 = vmatpush2.bf16.msra.mxu0 0
        %1084 = vmatprep.subr.bf16.mxu0 0
        %1085 = vmatpush2.bf16.msra.mxu0 0
        %1086 = vmatprep.subr.bf16.mxu0 0
        %1087 = vmatpush2.bf16.msra.mxu0 0
        %1088 = vmatprep.mubr.bf16.mxu0 0
        %1089 = vmatmul.mubr.bf16.gmra.mxu0 %v1039
        %v1090 = vpop.f32.mrf.mxu0
        %v1091 = vadd.f32 0.0, %v1090
        %v1092 = vpop.f32.mrf.mxu0
        %v1093 = vadd.f32 0.0, %v1092
        %v1094 = vpop.f32.mrf.mxu0
        %v1095 = vadd.f32 0.0, %v1094
        %v1096 = vpop.f32.mrf.mxu0
        %v1097 = vadd.f32 0.0, %v1096
        %1098 = vmatprep.mubr.bf16.mxu0 0
        %1099 = vmatmul.mubr.bf16.gmra.mxu0 %v1042
        %v1100 = vpop.f32.mrf.mxu0
        %v1101 = vadd.f32 0.0, %v1100
        %v1102 = vpop.f32.mrf.mxu0
        %v1103 = vadd.f32 0.0, %v1102
        %v1104 = vpop.f32.mrf.mxu0
        %v1105 = vadd.f32 0.0, %v1104
        %v1106 = vpop.f32.mrf.mxu0
        %v1107 = vadd.f32 0.0, %v1106
        %1108 = vmatprep.mubr.bf16.mxu0 0
        %1109 = vmatmul.mubr.bf16.gmra.mxu0 %v1045
        %v1110 = vpop.f32.mrf.mxu0
        %v1111 = vadd.f32 0.0, %v1110
        %v1112 = vpop.f32.mrf.mxu0
        %v1113 = vadd.f32 0.0, %v1112
        %v1114 = vpop.f32.mrf.mxu0
        %v1115 = vadd.f32 0.0, %v1114
        %v1116 = vpop.f32.mrf.mxu0
        %v1117 = vadd.f32 0.0, %v1116
        %1118 = vmatprep.mubr.bf16.mxu0 0
        %1119 = vmatmul.mubr.bf16.gmra.mxu0 %v1048
        %v1120 = vpop.f32.mrf.mxu0
        %v1121 = vadd.f32 0.0, %v1120
        %v1122 = vpop.f32.mrf.mxu0
        %v1123 = vadd.f32 0.0, %v1122
        %v1124 = vpop.f32.mrf.mxu0
        %v1125 = vadd.f32 0.0, %v1124
        %v1126 = vpop.f32.mrf.mxu0
        %v1127 = vadd.f32 0.0, %v1126
        %1128 = vmatprep.mubr.bf16.mxu0 0
        %1129 = vmatmul.mubr.bf16.gmra.mxu0 %v1051
        %v1130 = vpop.f32.mrf.mxu0
        %v1131 = vadd.f32 0.0, %v1130
        %v1132 = vpop.f32.mrf.mxu0
        %v1133 = vadd.f32 0.0, %v1132
        %v1134 = vpop.f32.mrf.mxu0
        %v1135 = vadd.f32 0.0, %v1134
        %v1136 = vpop.f32.mrf.mxu0
        %v1137 = vadd.f32 0.0, %v1136
        %1138 = vmatprep.mubr.bf16.mxu0 0
        %1139 = vmatmul.mubr.bf16.gmra.mxu0 %v1054
        %v1140 = vpop.f32.mrf.mxu0
        %v1141 = vadd.f32 0.0, %v1140
        %v1142 = vpop.f32.mrf.mxu0
        %v1143 = vadd.f32 0.0, %v1142
        %v1144 = vpop.f32.mrf.mxu0
        %v1145 = vadd.f32 0.0, %v1144
        %v1146 = vpop.f32.mrf.mxu0
        %v1147 = vadd.f32 0.0, %v1146
        %1148 = vdwg.mxu0
        %v1149 = vadd.f32 %v981, %v1091
        %v1150 = vadd.f32 %v982, %v1093
        %v1151 = vadd.f32 %v983, %v1095
        %v1152 = vadd.f32 %v984, %v1097
        %v1153 = vadd.f32 %v985, %v1101
        %v1154 = vadd.f32 %v986, %v1103
        %v1155 = vadd.f32 %v987, %v1105
        %v1156 = vadd.f32 %v988, %v1107
        %v1157 = vadd.f32 %v989, %v1111
        %v1158 = vadd.f32 %v990, %v1113
        %v1159 = vadd.f32 %v991, %v1115
        %v1160 = vadd.f32 %v992, %v1117
        %v1161 = vadd.f32 %v993, %v1121
        %v1162 = vadd.f32 %v994, %v1123
        %v1163 = vadd.f32 %v995, %v1125
        %v1164 = vadd.f32 %v996, %v1127
        %v1165 = vadd.f32 %v997, %v1131
        %v1166 = vadd.f32 %v998, %v1133
        %v1167 = vadd.f32 %v999, %v1135
        %v1168 = vadd.f32 %v1000, %v1137
        %v1169 = vadd.f32 %v1001, %v1141
        %v1170 = vadd.f32 %v1002, %v1143
        %v1171 = vadd.f32 %v1003, %v1145
        %v1172 = vadd.f32 %v1004, %v1147
        %v1173 = vunpack.c.h.b16 %v500
        %v1174 = vunpack.c.h.b16 %v502
        %v1175 = vunpack.c.h.b16 %v504
        %v1176 = vunpack.c.h.b16 %v506
        %v1177 = vunpack.c.h.b16 %v508
        %v1178 = vunpack.c.h.b16 %v510
        %v1179 = vunpack.c.h.b16 %v512
        %v1180 = vunpack.c.h.b16 %v514
        %v1181 = vunpack.c.h.b16 %v516
        %v1182 = vunpack.c.h.b16 %v518
        %v1183 = vunpack.c.h.b16 %v520
        %v1184 = vunpack.c.h.b16 %v522
        %v1185 = vpack.c.b16 %v1174, %v1173
        %v1186 = vpack.c.b16 %v1176, %v1175
        %v1187 = vpack.c.b16 %v1178, %v1177
        %v1188 = vpack.c.b16 %v1180, %v1179
        %v1189 = vpack.c.b16 %v1182, %v1181
        %v1190 = vpack.c.b16 %v1184, %v1183
        %1191 = vrot.lane.b32.xlu0 %v494, 96
        %v1192 = vpop.permute.xlu0 %1191
        %1193 = vrot.lane.b32.xlu0 %v495, 96
        %v1194 = vpop.permute.xlu0 %1193
        %1195 = vrot.lane.b32.xlu0 %v496, 96
        %v1196 = vpop.permute.xlu0 %1195
        %1197 = vrot.lane.b32.xlu0 %v497, 96
        %v1198 = vpop.permute.xlu0 %1197
        %1199 = vrot.lane.b32.xlu0 %v498, 96
        %v1200 = vpop.permute.xlu0 %1199
        %1201 = vrot.lane.b32.xlu0 %v499, 96
        %v1202 = vpop.permute.xlu0 %1201
        %vm1203 = vcmask 785408
        %v1204 = vsel %vm1203, %v1192, %v1194
        %v1205 = vsel %vm1203, %v1194, %v1196
        %v1206 = vsel %vm1203, %v1198, %v1200
        %v1207 = vsel %vm1203, %v1200, %v1202
        %v1213 = vsel %vm593, %v1185, 0
        %v1216 = vsel %vm593, %v1186, 0
        %v1219 = vsel %vm593, %v1187, 0
        %v1222 = vsel %vm593, %v1188, 0
        %v1225 = vsel %vm593, %v1189, 0
        %v1228 = vsel %vm593, %v1190, 0
        %1230 = vmatprep.subr.bf16.mxu0 0
        %1231 = vmatpush1.bf16.msra.mxu0 0
        %1232 = vmatprep.subr.bf16.mxu0 0
        %1233 = vmatpush1.bf16.msra.mxu0 0
        %1234 = vmatprep.subr.bf16.mxu0 0
        %1235 = vmatpush1.bf16.msra.mxu0 0
        %1236 = vmatprep.subr.bf16.mxu0 0
        %1237 = vmatpush1.bf16.msra.mxu0 0
        %1238 = vmatprep.subr.bf16.mxu0 0
        %1239 = vmatpush1.bf16.msra.mxu0 0
        %1240 = vmatprep.subr.bf16.mxu0 0
        %1241 = vmatpush1.bf16.msra.mxu0 0
        %1242 = vmatprep.subr.bf16.mxu0 %v1207
        %1243 = vmatpush1.bf16.msra.mxu0 %v1206
        %1244 = vmatprep.subr.bf16.mxu0 %v1205
        %1245 = vmatpush1.bf16.msra.mxu0 %v1204
        %1246 = vmatprep.subr.bf16.mxu0 0
        %1247 = vmatpush2.bf16.msra.mxu0 0
        %1248 = vmatprep.subr.bf16.mxu0 0
        %1249 = vmatpush2.bf16.msra.mxu0 0
        %1250 = vmatprep.subr.bf16.mxu0 0
        %1251 = vmatpush2.bf16.msra.mxu0 0
        %1252 = vmatprep.subr.bf16.mxu0 0
        %1253 = vmatpush2.bf16.msra.mxu0 0
        %1254 = vmatprep.subr.bf16.mxu0 0
        %1255 = vmatpush2.bf16.msra.mxu0 0
        %1256 = vmatprep.subr.bf16.mxu0 0
        %1257 = vmatpush2.bf16.msra.mxu0 0
        %1258 = vmatprep.subr.bf16.mxu0 0
        %1259 = vmatpush2.bf16.msra.mxu0 0
        %1260 = vmatprep.subr.bf16.mxu0 0
        %1261 = vmatpush2.bf16.msra.mxu0 0
        %1262 = vmatprep.mubr.bf16.mxu0 0
        %1263 = vmatmul.mubr.bf16.gmra.mxu0 %v1213
        %v1264 = vpop.f32.mrf.mxu0
        %v1265 = vadd.f32 0.0, %v1264
        %v1266 = vpop.f32.mrf.mxu0
        %v1267 = vadd.f32 0.0, %v1266
        %v1268 = vpop.f32.mrf.mxu0
        %v1269 = vadd.f32 0.0, %v1268
        %v1270 = vpop.f32.mrf.mxu0
        %v1271 = vadd.f32 0.0, %v1270
        %1272 = vmatprep.mubr.bf16.mxu0 0
        %1273 = vmatmul.mubr.bf16.gmra.mxu0 %v1216
        %v1274 = vpop.f32.mrf.mxu0
        %v1275 = vadd.f32 0.0, %v1274
        %v1276 = vpop.f32.mrf.mxu0
        %v1277 = vadd.f32 0.0, %v1276
        %v1278 = vpop.f32.mrf.mxu0
        %v1279 = vadd.f32 0.0, %v1278
        %v1280 = vpop.f32.mrf.mxu0
        %v1281 = vadd.f32 0.0, %v1280
        %1282 = vmatprep.mubr.bf16.mxu0 0
        %1283 = vmatmul.mubr.bf16.gmra.mxu0 %v1219
        %v1284 = vpop.f32.mrf.mxu0
        %v1285 = vadd.f32 0.0, %v1284
        %v1286 = vpop.f32.mrf.mxu0
        %v1287 = vadd.f32 0.0, %v1286
        %v1288 = vpop.f32.mrf.mxu0
        %v1289 = vadd.f32 0.0, %v1288
        %v1290 = vpop.f32.mrf.mxu0
        %v1291 = vadd.f32 0.0, %v1290
        %1292 = vmatprep.mubr.bf16.mxu0 0
        %1293 = vmatmul.mubr.bf16.gmra.mxu0 %v1222
        %v1294 = vpop.f32.mrf.mxu0
        %v1295 = vadd.f32 0.0, %v1294
        %v1296 = vpop.f32.mrf.mxu0
        %v1297 = vadd.f32 0.0, %v1296
        %v1298 = vpop.f32.mrf.mxu0
        %v1299 = vadd.f32 0.0, %v1298
        %v1300 = vpop.f32.mrf.mxu0
        %v1301 = vadd.f32 0.0, %v1300
        %1302 = vmatprep.mubr.bf16.mxu0 0
        %1303 = vmatmul.mubr.bf16.gmra.mxu0 %v1225
        %v1304 = vpop.f32.mrf.mxu0
        %v1305 = vadd.f32 0.0, %v1304
        %v1306 = vpop.f32.mrf.mxu0
        %v1307 = vadd.f32 0.0, %v1306
        %v1308 = vpop.f32.mrf.mxu0
        %v1309 = vadd.f32 0.0, %v1308
        %v1310 = vpop.f32.mrf.mxu0
        %v1311 = vadd.f32 0.0, %v1310
        %1312 = vmatprep.mubr.bf16.mxu0 0
        %1313 = vmatmul.mubr.bf16.gmra.mxu0 %v1228
        %v1314 = vpop.f32.mrf.mxu0
        %v1315 = vadd.f32 0.0, %v1314
        %v1316 = vpop.f32.mrf.mxu0
        %v1317 = vadd.f32 0.0, %v1316
        %v1318 = vpop.f32.mrf.mxu0
        %v1319 = vadd.f32 0.0, %v1318
        %v1320 = vpop.f32.mrf.mxu0
        %v1321 = vadd.f32 0.0, %v1320
        %1322 = vdwg.mxu0
        %v1323 = vadd.f32 %v1149, %v1265
        %v1324 = vadd.f32 %v1150, %v1267
        %v1325 = vadd.f32 %v1151, %v1269
        %v1326 = vadd.f32 %v1152, %v1271
        %v1327 = vadd.f32 %v1153, %v1275
        %v1328 = vadd.f32 %v1154, %v1277
        %v1329 = vadd.f32 %v1155, %v1279
        %v1330 = vadd.f32 %v1156, %v1281
        %v1331 = vadd.f32 %v1157, %v1285
        %v1332 = vadd.f32 %v1158, %v1287
        %v1333 = vadd.f32 %v1159, %v1289
        %v1334 = vadd.f32 %v1160, %v1291
        %v1335 = vadd.f32 %v1161, %v1295
        %v1336 = vadd.f32 %v1162, %v1297
        %v1337 = vadd.f32 %v1163, %v1299
        %v1338 = vadd.f32 %v1164, %v1301
        %v1339 = vadd.f32 %v1165, %v1305
        %v1340 = vadd.f32 %v1166, %v1307
        %v1341 = vadd.f32 %v1167, %v1309
        %v1342 = vadd.f32 %v1168, %v1311
        %v1343 = vadd.f32 %v1169, %v1315
        %v1344 = vadd.f32 %v1170, %v1317
        %v1345 = vadd.f32 %v1171, %v1319
        %v1346 = vadd.f32 %v1172, %v1321
        %1347 = vrot.lane.b32.xlu0 %v1185, 96
        %v1348 = vpop.permute.xlu0 %1347
        %1349 = vrot.lane.b32.xlu0 %v1186, 96
        %v1350 = vpop.permute.xlu0 %1349
        %1351 = vrot.lane.b32.xlu0 %v1187, 96
        %v1352 = vpop.permute.xlu0 %1351
        %1353 = vrot.lane.b32.xlu0 %v1188, 96
        %v1354 = vpop.permute.xlu0 %1353
        %1355 = vrot.lane.b32.xlu0 %v1189, 96
        %v1356 = vpop.permute.xlu0 %1355
        %1357 = vrot.lane.b32.xlu0 %v1190, 96
        %v1358 = vpop.permute.xlu0 %1357
        %1359 = vrot.lane.b32.xlu0 %v494, 95
        %v1360 = vpop.permute.xlu0 %1359
        %1361 = vrot.lane.b32.xlu0 %v495, 95
        %v1362 = vpop.permute.xlu0 %1361
        %1363 = vrot.lane.b32.xlu0 %v496, 95
        %v1364 = vpop.permute.xlu0 %1363
        %1365 = vrot.lane.b32.xlu0 %v497, 95
        %v1366 = vpop.permute.xlu0 %1365
        %1367 = vrot.lane.b32.xlu0 %v498, 95
        %v1368 = vpop.permute.xlu0 %1367
        %1369 = vrot.lane.b32.xlu0 %v499, 95
        %v1370 = vpop.permute.xlu0 %1369
        %vm1371 = vcmask 777216
        %v1372 = vsel %vm1371, %v1360, %v1362
        %v1373 = vsel %vm1371, %v1362, %v1364
        %v1374 = vsel %vm1371, %v1366, %v1368
        %v1375 = vsel %vm1371, %v1368, %v1370
        %v1381 = vsel %vm593, %v1348, 0
        %v1384 = vsel %vm593, %v1350, 0
        %v1387 = vsel %vm593, %v1352, 0
        %v1390 = vsel %vm593, %v1354, 0
        %v1393 = vsel %vm593, %v1356, 0
        %v1396 = vsel %vm593, %v1358, 0
        %1398 = vmatprep.subr.bf16.mxu0 0
        %1399 = vmatpush1.bf16.msra.mxu0 0
        %1400 = vmatprep.subr.bf16.mxu0 0
        %1401 = vmatpush1.bf16.msra.mxu0 0
        %1402 = vmatprep.subr.bf16.mxu0 0
        %1403 = vmatpush1.bf16.msra.mxu0 0
        %1404 = vmatprep.subr.bf16.mxu0 0
        %1405 = vmatpush1.bf16.msra.mxu0 0
        %1406 = vmatprep.subr.bf16.mxu0 0
        %1407 = vmatpush1.bf16.msra.mxu0 0
        %1408 = vmatprep.subr.bf16.mxu0 0
        %1409 = vmatpush1.bf16.msra.mxu0 0
        %1410 = vmatprep.subr.bf16.mxu0 %v1375
        %1411 = vmatpush1.bf16.msra.mxu0 %v1374
        %1412 = vmatprep.subr.bf16.mxu0 %v1373
        %1413 = vmatpush1.bf16.msra.mxu0 %v1372
        %1414 = vmatprep.subr.bf16.mxu0 0
        %1415 = vmatpush2.bf16.msra.mxu0 0
        %1416 = vmatprep.subr.bf16.mxu0 0
        %1417 = vmatpush2.bf16.msra.mxu0 0
        %1418 = vmatprep.subr.bf16.mxu0 0
        %1419 = vmatpush2.bf16.msra.mxu0 0
        %1420 = vmatprep.subr.bf16.mxu0 0
        %1421 = vmatpush2.bf16.msra.mxu0 0
        %1422 = vmatprep.subr.bf16.mxu0 0
        %1423 = vmatpush2.bf16.msra.mxu0 0
        %1424 = vmatprep.subr.bf16.mxu0 0
        %1425 = vmatpush2.bf16.msra.mxu0 0
        %1426 = vmatprep.subr.bf16.mxu0 0
        %1427 = vmatpush2.bf16.msra.mxu0 0
        %1428 = vmatprep.subr.bf16.mxu0 0
        %1429 = vmatpush2.bf16.msra.mxu0 0
        %1430 = vmatprep.mubr.bf16.mxu0 0
        %1431 = vmatmul.mubr.bf16.gmra.mxu0 %v1381
        %v1432 = vpop.f32.mrf.mxu0
        %v1433 = vadd.f32 0.0, %v1432
        %v1434 = vpop.f32.mrf.mxu0
        %v1435 = vadd.f32 0.0, %v1434
        %v1436 = vpop.f32.mrf.mxu0
        %v1437 = vadd.f32 0.0, %v1436
        %v1438 = vpop.f32.mrf.mxu0
        %v1439 = vadd.f32 0.0, %v1438
        %1440 = vmatprep.mubr.bf16.mxu0 0
        %1441 = vmatmul.mubr.bf16.gmra.mxu0 %v1384
        %v1442 = vpop.f32.mrf.mxu0
        %v1443 = vadd.f32 0.0, %v1442
        %v1444 = vpop.f32.mrf.mxu0
        %v1445 = vadd.f32 0.0, %v1444
        %v1446 = vpop.f32.mrf.mxu0
        %v1447 = vadd.f32 0.0, %v1446
        %v1448 = vpop.f32.mrf.mxu0
        %v1449 = vadd.f32 0.0, %v1448
        %1450 = vmatprep.mubr.bf16.mxu0 0
        %1451 = vmatmul.mubr.bf16.gmra.mxu0 %v1387
        %v1452 = vpop.f32.mrf.mxu0
        %v1453 = vadd.f32 0.0, %v1452
        %v1454 = vpop.f32.mrf.mxu0
        %v1455 = vadd.f32 0.0, %v1454
        %v1456 = vpop.f32.mrf.mxu0
        %v1457 = vadd.f32 0.0, %v1456
        %v1458 = vpop.f32.mrf.mxu0
        %v1459 = vadd.f32 0.0, %v1458
        %1460 = vmatprep.mubr.bf16.mxu0 0
        %1461 = vmatmul.mubr.bf16.gmra.mxu0 %v1390
        %v1462 = vpop.f32.mrf.mxu0
        %v1463 = vadd.f32 0.0, %v1462
        %v1464 = vpop.f32.mrf.mxu0
        %v1465 = vadd.f32 0.0, %v1464
        %v1466 = vpop.f32.mrf.mxu0
        %v1467 = vadd.f32 0.0, %v1466
        %v1468 = vpop.f32.mrf.mxu0
        %v1469 = vadd.f32 0.0, %v1468
        %1470 = vmatprep.mubr.bf16.mxu0 0
        %1471 = vmatmul.mubr.bf16.gmra.mxu0 %v1393
        %v1472 = vpop.f32.mrf.mxu0
        %v1473 = vadd.f32 0.0, %v1472
        %v1474 = vpop.f32.mrf.mxu0
        %v1475 = vadd.f32 0.0, %v1474
        %v1476 = vpop.f32.mrf.mxu0
        %v1477 = vadd.f32 0.0, %v1476
        %v1478 = vpop.f32.mrf.mxu0
        %v1479 = vadd.f32 0.0, %v1478
        %1480 = vmatprep.mubr.bf16.mxu0 0
        %1481 = vmatmul.mubr.bf16.gmra.mxu0 %v1396
        %v1482 = vpop.f32.mrf.mxu0
        %v1483 = vadd.f32 0.0, %v1482
        %v1484 = vpop.f32.mrf.mxu0
        %v1485 = vadd.f32 0.0, %v1484
        %v1486 = vpop.f32.mrf.mxu0
        %v1487 = vadd.f32 0.0, %v1486
        %v1488 = vpop.f32.mrf.mxu0
        %v1489 = vadd.f32 0.0, %v1488
        %1490 = vdwg.mxu0
        %v1491 = vadd.f32 %v1323, %v1433
        %v1492 = vadd.f32 %v1324, %v1435
        %v1493 = vadd.f32 %v1325, %v1437
        %v1494 = vadd.f32 %v1326, %v1439
        %v1495 = vadd.f32 %v1327, %v1443
        %v1496 = vadd.f32 %v1328, %v1445
        %v1497 = vadd.f32 %v1329, %v1447
        %v1498 = vadd.f32 %v1330, %v1449
        %v1499 = vadd.f32 %v1331, %v1453
        %v1500 = vadd.f32 %v1332, %v1455
        %v1501 = vadd.f32 %v1333, %v1457
        %v1502 = vadd.f32 %v1334, %v1459
        %v1503 = vadd.f32 %v1335, %v1463
        %v1504 = vadd.f32 %v1336, %v1465
        %v1505 = vadd.f32 %v1337, %v1467
        %v1506 = vadd.f32 %v1338, %v1469
        %v1507 = vadd.f32 %v1339, %v1473
        %v1508 = vadd.f32 %v1340, %v1475
        %v1509 = vadd.f32 %v1341, %v1477
        %v1510 = vadd.f32 %v1342, %v1479
        %v1511 = vadd.f32 %v1343, %v1483
        %v1512 = vadd.f32 %v1344, %v1485
        %v1513 = vadd.f32 %v1345, %v1487
        %v1514 = vadd.f32 %v1346, %v1489
        %1515 = vrot.lane.b32.xlu0 %v1185, 64
        %v1516 = vpop.permute.xlu0 %1515
        %1517 = vrot.lane.b32.xlu0 %v1186, 64
        %v1518 = vpop.permute.xlu0 %1517
        %1519 = vrot.lane.b32.xlu0 %v1187, 64
        %v1520 = vpop.permute.xlu0 %1519
        %1521 = vrot.lane.b32.xlu0 %v1188, 64
        %v1522 = vpop.permute.xlu0 %1521
        %1523 = vrot.lane.b32.xlu0 %v1189, 64
        %v1524 = vpop.permute.xlu0 %1523
        %1525 = vrot.lane.b32.xlu0 %v1190, 64
        %v1526 = vpop.permute.xlu0 %1525
        %1527 = vrot.lane.b32.xlu0 %v494, 81
        %v1528 = vpop.permute.xlu0 %1527
        %1529 = vrot.lane.b32.xlu0 %v495, 81
        %v1530 = vpop.permute.xlu0 %1529
        %1531 = vrot.lane.b32.xlu0 %v496, 81
        %v1532 = vpop.permute.xlu0 %1531
        %1533 = vrot.lane.b32.xlu0 %v497, 81
        %v1534 = vpop.permute.xlu0 %1533
        %1535 = vrot.lane.b32.xlu0 %v498, 81
        %v1536 = vpop.permute.xlu0 %1535
        %1537 = vrot.lane.b32.xlu0 %v499, 81
        %v1538 = vpop.permute.xlu0 %1537
        %vm1539 = vcmask 662528
        %v1540 = vsel %vm1539, %v1528, %v1530
        %v1541 = vsel %vm1539, %v1530, %v1532
        %v1542 = vsel %vm1539, %v1534, %v1536
        %v1543 = vsel %vm1539, %v1536, %v1538
        %v1549 = vsel %vm593, %v1516, 0
        %v1552 = vsel %vm593, %v1518, 0
        %v1555 = vsel %vm593, %v1520, 0
        %v1558 = vsel %vm593, %v1522, 0
        %v1561 = vsel %vm593, %v1524, 0
        %v1564 = vsel %vm593, %v1526, 0
        %1566 = vmatprep.subr.bf16.mxu0 0
        %1567 = vmatpush1.bf16.msra.mxu0 0
        %1568 = vmatprep.subr.bf16.mxu0 0
        %1569 = vmatpush1.bf16.msra.mxu0 0
        %1570 = vmatprep.subr.bf16.mxu0 0
        %1571 = vmatpush1.bf16.msra.mxu0 0
        %1572 = vmatprep.subr.bf16.mxu0 0
        %1573 = vmatpush1.bf16.msra.mxu0 0
        %1574 = vmatprep.subr.bf16.mxu0 0
        %1575 = vmatpush1.bf16.msra.mxu0 0
        %1576 = vmatprep.subr.bf16.mxu0 0
        %1577 = vmatpush1.bf16.msra.mxu0 0
        %1578 = vmatprep.subr.bf16.mxu0 %v1543
        %1579 = vmatpush1.bf16.msra.mxu0 %v1542
        %1580 = vmatprep.subr.bf16.mxu0 %v1541
        %1581 = vmatpush1.bf16.msra.mxu0 %v1540
        %1582 = vmatprep.subr.bf16.mxu0 0
        %1583 = vmatpush2.bf16.msra.mxu0 0
        %1584 = vmatprep.subr.bf16.mxu0 0
        %1585 = vmatpush2.bf16.msra.mxu0 0
        %1586 = vmatprep.subr.bf16.mxu0 0
        %1587 = vmatpush2.bf16.msra.mxu0 0
        %1588 = vmatprep.subr.bf16.mxu0 0
        %1589 = vmatpush2.bf16.msra.mxu0 0
        %1590 = vmatprep.subr.bf16.mxu0 0
        %1591 = vmatpush2.bf16.msra.mxu0 0
        %1592 = vmatprep.subr.bf16.mxu0 0
        %1593 = vmatpush2.bf16.msra.mxu0 0
        %1594 = vmatprep.subr.bf16.mxu0 0
        %1595 = vmatpush2.bf16.msra.mxu0 0
        %1596 = vmatprep.subr.bf16.mxu0 0
        %1597 = vmatpush2.bf16.msra.mxu0 0
        %1598 = vmatprep.mubr.bf16.mxu0 0
        %1599 = vmatmul.mubr.bf16.gmra.mxu0 %v1549
        %v1600 = vpop.f32.mrf.mxu0
        %v1601 = vadd.f32 0.0, %v1600
        %v1602 = vpop.f32.mrf.mxu0
        %v1603 = vadd.f32 0.0, %v1602
        %v1604 = vpop.f32.mrf.mxu0
        %v1605 = vadd.f32 0.0, %v1604
        %v1606 = vpop.f32.mrf.mxu0
        %v1607 = vadd.f32 0.0, %v1606
        %1608 = vmatprep.mubr.bf16.mxu0 0
        %1609 = vmatmul.mubr.bf16.gmra.mxu0 %v1552
        %v1610 = vpop.f32.mrf.mxu0
        %v1611 = vadd.f32 0.0, %v1610
        %v1612 = vpop.f32.mrf.mxu0
        %v1613 = vadd.f32 0.0, %v1612
        %v1614 = vpop.f32.mrf.mxu0
        %v1615 = vadd.f32 0.0, %v1614
        %v1616 = vpop.f32.mrf.mxu0
        %v1617 = vadd.f32 0.0, %v1616
        %1618 = vmatprep.mubr.bf16.mxu0 0
        %1619 = vmatmul.mubr.bf16.gmra.mxu0 %v1555
        %v1620 = vpop.f32.mrf.mxu0
        %v1621 = vadd.f32 0.0, %v1620
        %v1622 = vpop.f32.mrf.mxu0
        %v1623 = vadd.f32 0.0, %v1622
        %v1624 = vpop.f32.mrf.mxu0
        %v1625 = vadd.f32 0.0, %v1624
        %v1626 = vpop.f32.mrf.mxu0
        %v1627 = vadd.f32 0.0, %v1626
        %1628 = vmatprep.mubr.bf16.mxu0 0
        %1629 = vmatmul.mubr.bf16.gmra.mxu0 %v1558
        %v1630 = vpop.f32.mrf.mxu0
        %v1631 = vadd.f32 0.0, %v1630
        %v1632 = vpop.f32.mrf.mxu0
        %v1633 = vadd.f32 0.0, %v1632
        %v1634 = vpop.f32.mrf.mxu0
        %v1635 = vadd.f32 0.0, %v1634
        %v1636 = vpop.f32.mrf.mxu0
        %v1637 = vadd.f32 0.0, %v1636
        %1638 = vmatprep.mubr.bf16.mxu0 0
        %1639 = vmatmul.mubr.bf16.gmra.mxu0 %v1561
        %v1640 = vpop.f32.mrf.mxu0
        %v1641 = vadd.f32 0.0, %v1640
        %v1642 = vpop.f32.mrf.mxu0
        %v1643 = vadd.f32 0.0, %v1642
        %v1644 = vpop.f32.mrf.mxu0
        %v1645 = vadd.f32 0.0, %v1644
        %v1646 = vpop.f32.mrf.mxu0
        %v1647 = vadd.f32 0.0, %v1646
        %1648 = vmatprep.mubr.bf16.mxu0 0
        %1649 = vmatmul.mubr.bf16.gmra.mxu0 %v1564
        %v1650 = vpop.f32.mrf.mxu0
        %v1651 = vadd.f32 0.0, %v1650
        %v1652 = vpop.f32.mrf.mxu0
        %v1653 = vadd.f32 0.0, %v1652
        %v1654 = vpop.f32.mrf.mxu0
        %v1655 = vadd.f32 0.0, %v1654
        %v1656 = vpop.f32.mrf.mxu0
        %v1657 = vadd.f32 0.0, %v1656
        %1658 = vdwg.mxu0
        %v1659 = vadd.f32 %v1491, %v1601
        %v1660 = vadd.f32 %v1492, %v1603
        %v1661 = vadd.f32 %v1493, %v1605
        %v1662 = vadd.f32 %v1494, %v1607
        %v1663 = vadd.f32 %v1495, %v1611
        %v1664 = vadd.f32 %v1496, %v1613
        %v1665 = vadd.f32 %v1497, %v1615
        %v1666 = vadd.f32 %v1498, %v1617
        %v1667 = vadd.f32 %v1499, %v1621
        %v1668 = vadd.f32 %v1500, %v1623
        %v1669 = vadd.f32 %v1501, %v1625
        %v1670 = vadd.f32 %v1502, %v1627
        %v1671 = vadd.f32 %v1503, %v1631
        %v1672 = vadd.f32 %v1504, %v1633
        %v1673 = vadd.f32 %v1505, %v1635
        %v1674 = vadd.f32 %v1506, %v1637
        %v1675 = vadd.f32 %v1507, %v1641
        %v1676 = vadd.f32 %v1508, %v1643
        %v1677 = vadd.f32 %v1509, %v1645
        %v1678 = vadd.f32 %v1510, %v1647
        %v1679 = vadd.f32 %v1511, %v1651
        %v1680 = vadd.f32 %v1512, %v1653
        %v1681 = vadd.f32 %v1513, %v1655
        %v1682 = vadd.f32 %v1514, %v1657
        %1683 = vrot.lane.b32.xlu0 %v1185, 32
        %v1684 = vpop.permute.xlu0 %1683
        %1685 = vrot.lane.b32.xlu0 %v1186, 32
        %v1686 = vpop.permute.xlu0 %1685
        %1687 = vrot.lane.b32.xlu0 %v1187, 32
        %v1688 = vpop.permute.xlu0 %1687
        %1689 = vrot.lane.b32.xlu0 %v1188, 32
        %v1690 = vpop.permute.xlu0 %1689
        %1691 = vrot.lane.b32.xlu0 %v1189, 32
        %v1692 = vpop.permute.xlu0 %1691
        %1693 = vrot.lane.b32.xlu0 %v1190, 32
        %v1694 = vpop.permute.xlu0 %1693
        %1695 = vrot.lane.b32.xlu0 %v494, 80
        %v1696 = vpop.permute.xlu0 %1695
        %1697 = vrot.lane.b32.xlu0 %v495, 80
        %v1698 = vpop.permute.xlu0 %1697
        %1699 = vrot.lane.b32.xlu0 %v496, 80
        %v1700 = vpop.permute.xlu0 %1699
        %1701 = vrot.lane.b32.xlu0 %v497, 80
        %v1702 = vpop.permute.xlu0 %1701
        %1703 = vrot.lane.b32.xlu0 %v498, 80
        %v1704 = vpop.permute.xlu0 %1703
        %1705 = vrot.lane.b32.xlu0 %v499, 80
        %v1706 = vpop.permute.xlu0 %1705
        %vm1707 = vcmask 654336
        %v1708 = vsel %vm1707, %v1696, %v1698
        %v1709 = vsel %vm1707, %v1698, %v1700
        %v1710 = vsel %vm1707, %v1702, %v1704
        %v1711 = vsel %vm1707, %v1704, %v1706
        %v1717 = vsel %vm593, %v1684, 0
        %v1720 = vsel %vm593, %v1686, 0
        %v1723 = vsel %vm593, %v1688, 0
        %v1726 = vsel %vm593, %v1690, 0
        %v1729 = vsel %vm593, %v1692, 0
        %v1732 = vsel %vm593, %v1694, 0
        %1734 = vmatprep.subr.bf16.mxu0 0
        %1735 = vmatpush1.bf16.msra.mxu0 0
        %1736 = vmatprep.subr.bf16.mxu0 0
        %1737 = vmatpush1.bf16.msra.mxu0 0
        %1738 = vmatprep.subr.bf16.mxu0 0
        %1739 = vmatpush1.bf16.msra.mxu0 0
        %1740 = vmatprep.subr.bf16.mxu0 0
        %1741 = vmatpush1.bf16.msra.mxu0 0
        %1742 = vmatprep.subr.bf16.mxu0 0
        %1743 = vmatpush1.bf16.msra.mxu0 0
        %1744 = vmatprep.subr.bf16.mxu0 0
        %1745 = vmatpush1.bf16.msra.mxu0 0
        %1746 = vmatprep.subr.bf16.mxu0 %v1711
        %1747 = vmatpush1.bf16.msra.mxu0 %v1710
        %1748 = vmatprep.subr.bf16.mxu0 %v1709
        %1749 = vmatpush1.bf16.msra.mxu0 %v1708
        %1750 = vmatprep.subr.bf16.mxu0 0
        %1751 = vmatpush2.bf16.msra.mxu0 0
        %1752 = vmatprep.subr.bf16.mxu0 0
        %1753 = vmatpush2.bf16.msra.mxu0 0
        %1754 = vmatprep.subr.bf16.mxu0 0
        %1755 = vmatpush2.bf16.msra.mxu0 0
        %1756 = vmatprep.subr.bf16.mxu0 0
        %1757 = vmatpush2.bf16.msra.mxu0 0
        %1758 = vmatprep.subr.bf16.mxu0 0
        %1759 = vmatpush2.bf16.msra.mxu0 0
        %1760 = vmatprep.subr.bf16.mxu0 0
        %1761 = vmatpush2.bf16.msra.mxu0 0
        %1762 = vmatprep.subr.bf16.mxu0 0
        %1763 = vmatpush2.bf16.msra.mxu0 0
        %1764 = vmatprep.subr.bf16.mxu0 0
        %1765 = vmatpush2.bf16.msra.mxu0 0
        %1766 = vmatprep.mubr.bf16.mxu0 0
        %1767 = vmatmul.mubr.bf16.gmra.mxu0 %v1717
        %v1768 = vpop.f32.mrf.mxu0
        %v1769 = vadd.f32 0.0, %v1768
        %v1770 = vpop.f32.mrf.mxu0
        %v1771 = vadd.f32 0.0, %v1770
        %v1772 = vpop.f32.mrf.mxu0
        %v1773 = vadd.f32 0.0, %v1772
        %v1774 = vpop.f32.mrf.mxu0
        %v1775 = vadd.f32 0.0, %v1774
        %1776 = vmatprep.mubr.bf16.mxu0 0
        %1777 = vmatmul.mubr.bf16.gmra.mxu0 %v1720
        %v1778 = vpop.f32.mrf.mxu0
        %v1779 = vadd.f32 0.0, %v1778
        %v1780 = vpop.f32.mrf.mxu0
        %v1781 = vadd.f32 0.0, %v1780
        %v1782 = vpop.f32.mrf.mxu0
        %v1783 = vadd.f32 0.0, %v1782
        %v1784 = vpop.f32.mrf.mxu0
        %v1785 = vadd.f32 0.0, %v1784
        %1786 = vmatprep.mubr.bf16.mxu0 0
        %1787 = vmatmul.mubr.bf16.gmra.mxu0 %v1723
        %v1788 = vpop.f32.mrf.mxu0
        %v1789 = vadd.f32 0.0, %v1788
        %v1790 = vpop.f32.mrf.mxu0
        %v1791 = vadd.f32 0.0, %v1790
        %v1792 = vpop.f32.mrf.mxu0
        %v1793 = vadd.f32 0.0, %v1792
        %v1794 = vpop.f32.mrf.mxu0
        %v1795 = vadd.f32 0.0, %v1794
        %1796 = vmatprep.mubr.bf16.mxu0 0
        %1797 = vmatmul.mubr.bf16.gmra.mxu0 %v1726
        %v1798 = vpop.f32.mrf.mxu0
        %v1799 = vadd.f32 0.0, %v1798
        %v1800 = vpop.f32.mrf.mxu0
        %v1801 = vadd.f32 0.0, %v1800
        %v1802 = vpop.f32.mrf.mxu0
        %v1803 = vadd.f32 0.0, %v1802
        %v1804 = vpop.f32.mrf.mxu0
        %v1805 = vadd.f32 0.0, %v1804
        %1806 = vmatprep.mubr.bf16.mxu0 0
        %1807 = vmatmul.mubr.bf16.gmra.mxu0 %v1729
        %v1808 = vpop.f32.mrf.mxu0
        %v1809 = vadd.f32 0.0, %v1808
        %v1810 = vpop.f32.mrf.mxu0
        %v1811 = vadd.f32 0.0, %v1810
        %v1812 = vpop.f32.mrf.mxu0
        %v1813 = vadd.f32 0.0, %v1812
        %v1814 = vpop.f32.mrf.mxu0
        %v1815 = vadd.f32 0.0, %v1814
        %1816 = vmatprep.mubr.bf16.mxu0 0
        %1817 = vmatmul.mubr.bf16.gmra.mxu0 %v1732
        %v1818 = vpop.f32.mrf.mxu0
        %v1819 = vadd.f32 0.0, %v1818
        %v1820 = vpop.f32.mrf.mxu0
        %v1821 = vadd.f32 0.0, %v1820
        %v1822 = vpop.f32.mrf.mxu0
        %v1823 = vadd.f32 0.0, %v1822
        %v1824 = vpop.f32.mrf.mxu0
        %v1825 = vadd.f32 0.0, %v1824
        %1826 = vdwg.mxu0
        %v1827 = vadd.f32 %v1659, %v1769
        %v1828 = vadd.f32 %v1660, %v1771
        %v1829 = vadd.f32 %v1661, %v1773
        %v1830 = vadd.f32 %v1662, %v1775
        %v1831 = vadd.f32 %v1663, %v1779
        %v1832 = vadd.f32 %v1664, %v1781
        %v1833 = vadd.f32 %v1665, %v1783
        %v1834 = vadd.f32 %v1666, %v1785
        %v1835 = vadd.f32 %v1667, %v1789
        %v1836 = vadd.f32 %v1668, %v1791
        %v1837 = vadd.f32 %v1669, %v1793
        %v1838 = vadd.f32 %v1670, %v1795
        %v1839 = vadd.f32 %v1671, %v1799
        %v1840 = vadd.f32 %v1672, %v1801
        %v1841 = vadd.f32 %v1673, %v1803
        %v1842 = vadd.f32 %v1674, %v1805
        %v1843 = vadd.f32 %v1675, %v1809
        %v1844 = vadd.f32 %v1676, %v1811
        %v1845 = vadd.f32 %v1677, %v1813
        %v1846 = vadd.f32 %v1678, %v1815
        %v1847 = vadd.f32 %v1679, %v1819
        %v1848 = vadd.f32 %v1680, %v1821
        %v1849 = vadd.f32 %v1681, %v1823
        %v1850 = vadd.f32 %v1682, %v1825
        %v1863 = vunpack.c.l.b16 %v501
        %v1864 = vunpack.c.l.b16 %v503
        %v1865 = vunpack.c.l.b16 %v505
        %v1866 = vunpack.c.l.b16 %v507
        %v1867 = vunpack.c.l.b16 %v509
        %v1868 = vunpack.c.l.b16 %v511
        %v1869 = vunpack.c.l.b16 %v513
        %v1870 = vunpack.c.l.b16 %v515
        %v1871 = vunpack.c.l.b16 %v517
        %v1872 = vunpack.c.l.b16 %v519
        %v1873 = vunpack.c.l.b16 %v521
        %v1874 = vunpack.c.l.b16 %v523
        %v1875 = vpack.c.b16 %v1864, %v1863
        %v1876 = vpack.c.b16 %v1866, %v1865
        %v1877 = vpack.c.b16 %v1868, %v1867
        %v1878 = vpack.c.b16 %v1870, %v1869
        %v1879 = vpack.c.b16 %v1872, %v1871
        %v1880 = vpack.c.b16 %v1874, %v1873
        %1881 = vrot.lane.b32.xlu0 %v494, 79
        %v1882 = vpop.permute.xlu0 %1881
        %1883 = vrot.lane.b32.xlu0 %v495, 79
        %v1884 = vpop.permute.xlu0 %1883
        %1885 = vrot.lane.b32.xlu0 %v496, 79
        %v1886 = vpop.permute.xlu0 %1885
        %1887 = vrot.lane.b32.xlu0 %v497, 79
        %v1888 = vpop.permute.xlu0 %1887
        %1889 = vrot.lane.b32.xlu0 %v498, 79
        %v1890 = vpop.permute.xlu0 %1889
        %1891 = vrot.lane.b32.xlu0 %v499, 79
        %v1892 = vpop.permute.xlu0 %1891
        %vm1893 = vcmask 646144
        %v1894 = vsel %vm1893, %v1882, %v1884
        %v1895 = vsel %vm1893, %v1884, %v1886
        %v1896 = vsel %vm1893, %v1888, %v1890
        %v1897 = vsel %vm1893, %v1890, %v1892
        %v1903 = vsel %vm593, %v1875, 0
        %v1906 = vsel %vm593, %v1876, 0
        %v1909 = vsel %vm593, %v1877, 0
        %v1912 = vsel %vm593, %v1878, 0
        %v1915 = vsel %vm593, %v1879, 0
        %v1918 = vsel %vm593, %v1880, 0
        %1920 = vmatprep.subr.bf16.mxu0 0
        %1921 = vmatpush1.bf16.msra.mxu0 0
        %1922 = vmatprep.subr.bf16.mxu0 0
        %1923 = vmatpush1.bf16.msra.mxu0 0
        %1924 = vmatprep.subr.bf16.mxu0 0
        %1925 = vmatpush1.bf16.msra.mxu0 0
        %1926 = vmatprep.subr.bf16.mxu0 0
        %1927 = vmatpush1.bf16.msra.mxu0 0
        %1928 = vmatprep.subr.bf16.mxu0 0
        %1929 = vmatpush1.bf16.msra.mxu0 0
        %1930 = vmatprep.subr.bf16.mxu0 0
        %1931 = vmatpush1.bf16.msra.mxu0 0
        %1932 = vmatprep.subr.bf16.mxu0 %v1897
        %1933 = vmatpush1.bf16.msra.mxu0 %v1896
        %1934 = vmatprep.subr.bf16.mxu0 %v1895
        %1935 = vmatpush1.bf16.msra.mxu0 %v1894
        %1936 = vmatprep.subr.bf16.mxu0 0
        %1937 = vmatpush2.bf16.msra.mxu0 0
        %1938 = vmatprep.subr.bf16.mxu0 0
        %1939 = vmatpush2.bf16.msra.mxu0 0
        %1940 = vmatprep.subr.bf16.mxu0 0
        %1941 = vmatpush2.bf16.msra.mxu0 0
        %1942 = vmatprep.subr.bf16.mxu0 0
        %1943 = vmatpush2.bf16.msra.mxu0 0
        %1944 = vmatprep.subr.bf16.mxu0 0
        %1945 = vmatpush2.bf16.msra.mxu0 0
        %1946 = vmatprep.subr.bf16.mxu0 0
        %1947 = vmatpush2.bf16.msra.mxu0 0
        %1948 = vmatprep.subr.bf16.mxu0 0
        %1949 = vmatpush2.bf16.msra.mxu0 0
        %1950 = vmatprep.subr.bf16.mxu0 0
        %1951 = vmatpush2.bf16.msra.mxu0 0
        %1952 = vmatprep.mubr.bf16.mxu0 0
        %1953 = vmatmul.mubr.bf16.gmra.mxu0 %v1903
        %v1954 = vpop.f32.mrf.mxu0
        %v1955 = vadd.f32 0.0, %v1954
        %v1956 = vpop.f32.mrf.mxu0
        %v1957 = vadd.f32 0.0, %v1956
        %v1958 = vpop.f32.mrf.mxu0
        %v1959 = vadd.f32 0.0, %v1958
        %v1960 = vpop.f32.mrf.mxu0
        %v1961 = vadd.f32 0.0, %v1960
        %1962 = vmatprep.mubr.bf16.mxu0 0
        %1963 = vmatmul.mubr.bf16.gmra.mxu0 %v1906
        %v1964 = vpop.f32.mrf.mxu0
        %v1965 = vadd.f32 0.0, %v1964
        %v1966 = vpop.f32.mrf.mxu0
        %v1967 = vadd.f32 0.0, %v1966
        %v1968 = vpop.f32.mrf.mxu0
        %v1969 = vadd.f32 0.0, %v1968
        %v1970 = vpop.f32.mrf.mxu0
        %v1971 = vadd.f32 0.0, %v1970
        %1972 = vmatprep.mubr.bf16.mxu0 0
        %1973 = vmatmul.mubr.bf16.gmra.mxu0 %v1909
        %v1974 = vpop.f32.mrf.mxu0
        %v1975 = vadd.f32 0.0, %v1974
        %v1976 = vpop.f32.mrf.mxu0
        %v1977 = vadd.f32 0.0, %v1976
        %v1978 = vpop.f32.mrf.mxu0
        %v1979 = vadd.f32 0.0, %v1978
        %v1980 = vpop.f32.mrf.mxu0
        %v1981 = vadd.f32 0.0, %v1980
        %1982 = vmatprep.mubr.bf16.mxu0 0
        %1983 = vmatmul.mubr.bf16.gmra.mxu0 %v1912
        %v1984 = vpop.f32.mrf.mxu0
        %v1985 = vadd.f32 0.0, %v1984
        %v1986 = vpop.f32.mrf.mxu0
        %v1987 = vadd.f32 0.0, %v1986
        %v1988 = vpop.f32.mrf.mxu0
        %v1989 = vadd.f32 0.0, %v1988
        %v1990 = vpop.f32.mrf.mxu0
        %v1991 = vadd.f32 0.0, %v1990
        %1992 = vmatprep.mubr.bf16.mxu0 0
        %1993 = vmatmul.mubr.bf16.gmra.mxu0 %v1915
        %v1994 = vpop.f32.mrf.mxu0
        %v1995 = vadd.f32 0.0, %v1994
        %v1996 = vpop.f32.mrf.mxu0
        %v1997 = vadd.f32 0.0, %v1996
        %v1998 = vpop.f32.mrf.mxu0
        %v1999 = vadd.f32 0.0, %v1998
        %v2000 = vpop.f32.mrf.mxu0
        %v2001 = vadd.f32 0.0, %v2000
        %2002 = vmatprep.mubr.bf16.mxu0 0
        %2003 = vmatmul.mubr.bf16.gmra.mxu0 %v1918
        %v2004 = vpop.f32.mrf.mxu0
        %v2005 = vadd.f32 0.0, %v2004
        %v2006 = vpop.f32.mrf.mxu0
        %v2007 = vadd.f32 0.0, %v2006
        %v2008 = vpop.f32.mrf.mxu0
        %v2009 = vadd.f32 0.0, %v2008
        %v2010 = vpop.f32.mrf.mxu0
        %v2011 = vadd.f32 0.0, %v2010
        %2012 = vdwg.mxu0
        %v2013 = vadd.f32 %v1827, %v1955
        %v2014 = vadd.f32 %v1828, %v1957
        %v2015 = vadd.f32 %v1829, %v1959
        %v2016 = vadd.f32 %v1830, %v1961
        %v2017 = vadd.f32 %v1831, %v1965
        %v2018 = vadd.f32 %v1832, %v1967
        %v2019 = vadd.f32 %v1833, %v1969
        %v2020 = vadd.f32 %v1834, %v1971
        %v2021 = vadd.f32 %v1835, %v1975
        %v2022 = vadd.f32 %v1836, %v1977
        %v2023 = vadd.f32 %v1837, %v1979
        %v2024 = vadd.f32 %v1838, %v1981
        %v2025 = vadd.f32 %v1839, %v1985
        %v2026 = vadd.f32 %v1840, %v1987
        %v2027 = vadd.f32 %v1841, %v1989
        %v2028 = vadd.f32 %v1842, %v1991
        %v2029 = vadd.f32 %v1843, %v1995
        %v2030 = vadd.f32 %v1844, %v1997
        %v2031 = vadd.f32 %v1845, %v1999
        %v2032 = vadd.f32 %v1846, %v2001
        %v2033 = vadd.f32 %v1847, %v2005
        %v2034 = vadd.f32 %v1848, %v2007
        %v2035 = vadd.f32 %v1849, %v2009
        %v2036 = vadd.f32 %v1850, %v2011
        %v2037 = vld [vmem:[%s5] sm:$0xff]
        %v2038 = vld [vmem:[%s5 + $0x8] sm:$0xff]
        %v2039 = vld [vmem:[%s5 + $0x10] sm:$0xff]
        %v2040 = vld [vmem:[%s5 + $0x18] sm:$0xff]
        %v2041 = vld [vmem:[%s5 + $0x20] sm:$0xff]
        %v2042 = vld [vmem:[%s5 + $0x28] sm:$0xff]
        %v2043 = vld [vmem:[%s5 + $0x30] sm:$0xff]
        %v2044 = vld [vmem:[%s5 + $0x38] sm:$0xff]
        %v2045 = vld [vmem:[%s5 + $0x40] sm:$0xff]
        %v2046 = vld [vmem:[%s5 + $0x48] sm:$0xff]
        %v2047 = vld [vmem:[%s5 + $0x50] sm:$0xff]
        %v2048 = vld [vmem:[%s5 + $0x58] sm:$0xff]
        %2050 = vset.pattern.permute.xlu0 0
        %2051 = vperm.xlu0 %2050, %v2037
        %v2052 = vpop.permute.xlu0 %2051
        %2055 = vset.pattern.permute.xlu0 0
        %2056 = vperm.xlu0 %2055, %v2038
        %v2057 = vpop.permute.xlu0 %2056
        %2060 = vset.pattern.permute.xlu0 0
        %2061 = vperm.xlu0 %2060, %v2039
        %v2062 = vpop.permute.xlu0 %2061
        %2065 = vset.pattern.permute.xlu0 0
        %2066 = vperm.xlu0 %2065, %v2040
        %v2067 = vpop.permute.xlu0 %2066
        %2070 = vset.pattern.permute.xlu0 0
        %2071 = vperm.xlu0 %2070, %v2041
        %v2072 = vpop.permute.xlu0 %2071
        %2075 = vset.pattern.permute.xlu0 0
        %2076 = vperm.xlu0 %2075, %v2042
        %v2077 = vpop.permute.xlu0 %2076
        %2080 = vset.pattern.permute.xlu0 0
        %2081 = vperm.xlu0 %2080, %v2043
        %v2082 = vpop.permute.xlu0 %2081
        %2085 = vset.pattern.permute.xlu0 0
        %2086 = vperm.xlu0 %2085, %v2044
        %v2087 = vpop.permute.xlu0 %2086
        %2090 = vset.pattern.permute.xlu0 0
        %2091 = vperm.xlu0 %2090, %v2045
        %v2092 = vpop.permute.xlu0 %2091
        %2095 = vset.pattern.permute.xlu0 0
        %2096 = vperm.xlu0 %2095, %v2046
        %v2097 = vpop.permute.xlu0 %2096
        %2100 = vset.pattern.permute.xlu0 0
        %2101 = vperm.xlu0 %2100, %v2047
        %v2102 = vpop.permute.xlu0 %2101
        %2105 = vset.pattern.permute.xlu0 0
        %2106 = vperm.xlu0 %2105, %v2048
        %v2107 = vpop.permute.xlu0 %2106
        %v2109 = vadd.f32 %v2013, %v2052
        %v2110 = vadd.f32 %v2014, %v2052
        %v2111 = vadd.f32 %v2015, %v2057
        %v2112 = vadd.f32 %v2016, %v2057
        %v2113 = vadd.f32 %v2017, %v2062
        %v2114 = vadd.f32 %v2018, %v2062
        %v2115 = vadd.f32 %v2019, %v2067
        %v2116 = vadd.f32 %v2020, %v2067
        %v2117 = vadd.f32 %v2021, %v2072
        %v2118 = vadd.f32 %v2022, %v2072
        %v2119 = vadd.f32 %v2023, %v2077
        %v2120 = vadd.f32 %v2024, %v2077
        %v2121 = vadd.f32 %v2025, %v2082
        %v2122 = vadd.f32 %v2026, %v2082
        %v2123 = vadd.f32 %v2027, %v2087
        %v2124 = vadd.f32 %v2028, %v2087
        %v2125 = vadd.f32 %v2029, %v2092
        %v2126 = vadd.f32 %v2030, %v2092
        %v2127 = vadd.f32 %v2031, %v2097
        %v2128 = vadd.f32 %v2032, %v2097
        %v2129 = vadd.f32 %v2033, %v2102
        %v2130 = vadd.f32 %v2034, %v2102
        %v2131 = vadd.f32 %v2035, %v2107
        %v2132 = vadd.f32 %v2036, %v2107
        %v2133 = vmul.f32 %v2109, 0.5
        %v2134 = vmul.f32 %v2110, 0.5
        %v2135 = vmul.f32 %v2111, 0.5
        %v2136 = vmul.f32 %v2112, 0.5
        %v2137 = vmul.f32 %v2113, 0.5
        %v2138 = vmul.f32 %v2114, 0.5
        %v2139 = vmul.f32 %v2115, 0.5
        %v2140 = vmul.f32 %v2116, 0.5
        %v2141 = vtanh.pop %v2133
        %v2142 = vtanh.pop %v2134
        %v2143 = vtanh.pop %v2135
        %v2144 = vtanh.pop %v2136
        %v2145 = vtanh.pop %v2137
        %v2146 = vtanh.pop %v2138
        %v2147 = vtanh.pop %v2139
        %v2148 = vtanh.pop %v2140
        %v2149 = vmul.f32 %v2141, 0.5
        %v2150 = vmul.f32 %v2142, 0.5
        %v2151 = vmul.f32 %v2143, 0.5
        %v2152 = vmul.f32 %v2144, 0.5
        %v2153 = vmul.f32 %v2145, 0.5
        %v2154 = vmul.f32 %v2146, 0.5
        %v2155 = vmul.f32 %v2147, 0.5
        %v2156 = vmul.f32 %v2148, 0.5
        %v2157 = vadd.f32 %v2149, 0.5
        %v2158 = vadd.f32 %v2150, 0.5
        %v2159 = vadd.f32 %v2151, 0.5
        %v2160 = vadd.f32 %v2152, 0.5
        %v2161 = vadd.f32 %v2153, 0.5
        %v2162 = vadd.f32 %v2154, 0.5
        %v2163 = vadd.f32 %v2155, 0.5
        %v2164 = vadd.f32 %v2156, 0.5
        %v2165 = vmul.f32 %v2117, 0.5
        %v2166 = vmul.f32 %v2118, 0.5
        %v2167 = vmul.f32 %v2119, 0.5
        %v2168 = vmul.f32 %v2120, 0.5
        %v2169 = vmul.f32 %v2121, 0.5
        %v2170 = vmul.f32 %v2122, 0.5
        %v2171 = vmul.f32 %v2123, 0.5
        %v2172 = vmul.f32 %v2124, 0.5
        %v2173 = vtanh.pop %v2165
        %v2174 = vtanh.pop %v2166
        %v2175 = vtanh.pop %v2167
        %v2176 = vtanh.pop %v2168
        %v2177 = vtanh.pop %v2169
        %v2178 = vtanh.pop %v2170
        %v2179 = vtanh.pop %v2171
        %v2180 = vtanh.pop %v2172
        %v2181 = vmul.f32 %v2173, 0.5
        %v2182 = vmul.f32 %v2174, 0.5
        %v2183 = vmul.f32 %v2175, 0.5
        %v2184 = vmul.f32 %v2176, 0.5
        %v2185 = vmul.f32 %v2177, 0.5
        %v2186 = vmul.f32 %v2178, 0.5
        %v2187 = vmul.f32 %v2179, 0.5
        %v2188 = vmul.f32 %v2180, 0.5
        %v2189 = vadd.f32 %v2181, 0.5
        %v2190 = vadd.f32 %v2182, 0.5
        %v2191 = vadd.f32 %v2183, 0.5
        %v2192 = vadd.f32 %v2184, 0.5
        %v2193 = vadd.f32 %v2185, 0.5
        %v2194 = vadd.f32 %v2186, 0.5
        %v2195 = vadd.f32 %v2187, 0.5
        %v2196 = vadd.f32 %v2188, 0.5
        %v2197 = vtanh.pop %v2125
        %v2198 = vtanh.pop %v2126
        %v2199 = vtanh.pop %v2127
        %v2200 = vtanh.pop %v2128
        %v2201 = vtanh.pop %v2129
        %v2202 = vtanh.pop %v2130
        %v2203 = vtanh.pop %v2131
        %v2204 = vtanh.pop %v2132
        %v2205 = vmul.f32 %v2157, %v2197
        %v2206 = vmul.f32 %v2158, %v2198
        %v2207 = vmul.f32 %v2159, %v2199
        %v2208 = vmul.f32 %v2160, %v2200
        %v2209 = vmul.f32 %v2161, %v2201
        %v2210 = vmul.f32 %v2162, %v2202
        %v2211 = vmul.f32 %v2163, %v2203
        %v2212 = vmul.f32 %v2164, %v2204
        %v2213 = vtanh.pop %v2205
        %v2214 = vtanh.pop %v2206
        %v2215 = vtanh.pop %v2207
        %v2216 = vtanh.pop %v2208
        %v2217 = vtanh.pop %v2209
        %v2218 = vtanh.pop %v2210
        %v2219 = vtanh.pop %v2211
        %v2220 = vtanh.pop %v2212
        %v2221 = vmul.f32 %v2189, %v2213
        %v2222 = vmul.f32 %v2190, %v2214
        %v2223 = vmul.f32 %v2191, %v2215
        %v2224 = vmul.f32 %v2192, %v2216
        %v2225 = vmul.f32 %v2193, %v2217
        %v2226 = vmul.f32 %v2194, %v2218
        %v2227 = vmul.f32 %v2195, %v2219
        %v2228 = vmul.f32 %v2196, %v2220
        %2229 = vst [vmem:[%s225] sm:$0xff] %v2221
        %2230 = vst [vmem:[%s225 + $0x8] sm:$0xff] %v2222
        %2231 = vst [vmem:[%s225 + $0x10] sm:$0xff] %v2223
        %2232 = vst [vmem:[%s225 + $0x18] sm:$0xff] %v2224
        %2233 = vst [vmem:[%s225 + $0x20] sm:$0xff] %v2225
        %2234 = vst [vmem:[%s225 + $0x28] sm:$0xff] %v2226
        %2235 = vst [vmem:[%s225 + $0x30] sm:$0xff] %v2227
        %2236 = vst [vmem:[%s225 + $0x38] sm:$0xff] %v2228
        %s2237 = sand.u32 %s151, 1
        %s2238 = sand.u32 %s151, 1
        %s2239 = smul.addr %s2238, 64
        %s2240 = scalar_lea.vmem [#allocation2], %s2239
        // Predicated region
        $region45: #{recurrent_conv_forward.1} parent=43 // pred_check
          %p2241 = pneg %p161
        $region46: #{recurrent_conv_forward.1} parent=43 // pred_check_branch
          %2243 = sbr.rel (%p2241) target = $region48
        $region47: #{recurrent_conv_forward.1} parent=43 // pred_region
          %s2244 = smul.u32 2, %s17
          %s2245 = smul.addr %s2244, 8
          %s2246 = scalar_lea.vmem %s6, %s2245
          // Predicated region
          $region49: #{recurrent_conv_forward.1} parent=47 // pred_check
            _
          $region50: #{recurrent_conv_forward.1} parent=47 // pred_check_branch
            %2248 = sbr.rel (0) target = $region52
          $region51: #{recurrent_conv_forward.1} parent=47 // pred_region
            // Predicated region
            $region53: #{recurrent_conv_forward.1} parent=51 // pred_check
              _
            $region54: #{recurrent_conv_forward.1} parent=51 // pred_check_branch
              %2250 = sbr.rel (0) target = $region56
            $region55: #{recurrent_conv_forward.1} parent=51 // pred_region
              loop: start=0, step=1, limit=1
              $region57: #{recurrent_conv_forward.1} parent=55 // loop_pre_header
                _
              $region58: #{recurrent_conv_forward.1} parent=55 // loop_header
                %s2252 = sphi 0, %s2256
                %p2253 = scmp.ge.s32.totalorder %s2252, 1
                %s2257 = sphi %s2240, %s2240
                %s2258 = sphi %s2246, %s2246
              $region59: #{recurrent_conv_forward.1} parent=55 // loop_header_branch
                %2255 = sbr.rel (%p2253) target = $region63
              $region60: #{recurrent_conv_forward.1} parent=55 // loop_body
                %v2259 = vld [vmem:[%s2257] sm:$0xff]
                %2260 = vst [vmem:[%s2258] sm:$0xff] %v2259
                %v2261 = vld [vmem:[%s2257 + $0x8] sm:$0xff]
                %2262 = vst [vmem:[%s2258 + $0x8] sm:$0xff] %v2261
                %v2263 = vld [vmem:[%s2257 + $0x10] sm:$0xff]
                %2264 = vst [vmem:[%s2258 + $0x20] sm:$0xff] %v2263
                %v2265 = vld [vmem:[%s2257 + $0x18] sm:$0xff]
                %2266 = vst [vmem:[%s2258 + $0x28] sm:$0xff] %v2265
                %v2267 = vld [vmem:[%s2257 + $0x20] sm:$0xff]
                %2268 = vst [vmem:[%s2258 + $0x40] sm:$0xff] %v2267
                %v2269 = vld [vmem:[%s2257 + $0x28] sm:$0xff]
                %2270 = vst [vmem:[%s2258 + $0x48] sm:$0xff] %v2269
                %v2271 = vld [vmem:[%s2257 + $0x30] sm:$0xff]
                %2272 = vst [vmem:[%s2258 + $0x60] sm:$0xff] %v2271
                %v2273 = vld [vmem:[%s2257 + $0x38] sm:$0xff]
                %2274 = vst [vmem:[%s2258 + $0x68] sm:$0xff] %v2273
              $region61: #{recurrent_conv_forward.1} parent=55 // loop_footer
                %s2256 = sadd.s32 1, %s2252
              $region62: #{recurrent_conv_forward.1} parent=55 // loop_footer_branch
                %2251 = sbr.rel target = $region58
              $region63: #{recurrent_conv_forward.1} parent=55 // loop_exit
                _
            $region56: #{recurrent_conv_forward.1} parent=51 // pred_fallthru
              _
            // Predicated region
            $region64: #{recurrent_conv_forward.1} parent=51 // pred_check
              _
            $region65: #{recurrent_conv_forward.1} parent=51 // pred_check_branch
              %2276 = sbr.rel target = $region67
            $region66: #{recurrent_conv_forward.1} parent=51 // pred_region
              _
            $region67: #{recurrent_conv_forward.1} parent=51 // pred_fallthru
              _
          $region52: #{recurrent_conv_forward.1} parent=47 // pred_fallthru
            _
          %2277 = vnop
        $region48: #{recurrent_conv_forward.1} parent=43 // pred_fallthru
          _
      $region44: #{recurrent_conv_forward.1} parent=5 // pred_fallthru
        _
      %p2278 = scmp.le.s32.totalorder 2, %s12
      // Predicated region
      $region68: #{recurrent_conv_forward.1} parent=5 // pred_check
        %p2279 = pneg %p2278
      $region69: #{recurrent_conv_forward.1} parent=5 // pred_check_branch
        %2281 = sbr.rel (%p2279) target = $region71
      $region70: #{recurrent_conv_forward.1} parent=5 // pred_region
        %s2282 = ssub.s32 %s12, 2
        // Predicated region
        $region72: #{recurrent_conv_forward.1} parent=70 // pred_check
          %p2283 = pneg %p167
        $region73: #{recurrent_conv_forward.1} parent=70 // pred_check_branch
          %2285 = sbr.rel (%p2283) target = $region75
        $region74: #{recurrent_conv_forward.1} parent=70 // pred_region
          %s2286 = sand.u32 %s152, 1
          %s2287 = sand.u32 %s152, 1
          %s2288 = smul.addr %s2287, 64
          %s2289 = scalar_lea.vmem [#allocation2], %s2288
        $region75: #{recurrent_conv_forward.1} parent=70 // pred_fallthru
          _
      $region71: #{recurrent_conv_forward.1} parent=5 // pred_fallthru
        _
    $region6: #{recurrent_conv_forward.1} parent=1 // loop_footer
      %s16 = sadd.s32 1, %s12
    $region7: #{recurrent_conv_forward.1} parent=1 // loop_footer_branch
      %11 = sbr.rel target = $region3
    $region8: #{recurrent_conv_forward.1} parent=1 // loop_exit
      _

</llo_original>
